<compile_context>
chip_gen: v6e
topology: v6e:2x2x1
jax: 0.10.0
libtpu: 0.0.40
codegen_flags: <defaults>
</compile_context>

<pallas_src>
import jax
import jax.numpy as jnp
from jax.experimental import pallas as pl
from jax.experimental.pallas import tpu as pltpu

BN_EPS = 1e-5
HIDDEN = 512
N_HIDDEN_LAYERS = 4


def _bn_relu_fold(h, gamma, beta, inv_b):
    """Training-mode BatchNorm1d folded to per-feature scale/shift, then ReLU (f32).

    One-pass batch stats with a non-negativity clamp on the variance.
    Hot (B, 512) path is: h*h (for s2), h*scale, +shift, max  — ~3 VPU ops/element.
    """
    s1 = jnp.sum(h, axis=0, keepdims=True)
    s2 = jnp.sum(h * h, axis=0, keepdims=True)
    mu = s1 * inv_b
    var = jnp.maximum(s2 * inv_b - mu * mu, 0.0)      # clamp: avoid rsqrt(<0) -> NaN
    scale = gamma * jax.lax.rsqrt(var + BN_EPS)       # EUP rsqrt, (1, 512) only
    shift = beta - mu * scale
    return jnp.maximum(h * scale + shift, 0.0)


def _make_kernel(b_real, b_pad):
    """Build the layer-gridded kernel for a (b_pad, *) padded batch of b_real rows."""
    inv_b = 1.0 / float(b_real)
    need_mask = b_pad != b_real

    def kernel(x_ref, w1_ref, wstack_ref, slab_ref, b5_ref, o_ref, act_ref):
        k = pl.program_id(0)   # grid step k computes layer k+1

        def row_mask():
            rows = jax.lax.broadcasted_iota(jnp.int32, (b_pad, 1), 0)
            return (rows < b_real).astype(jnp.float32)

        # ---- layer 1 (no residual), grid step 0 --------------------------------
        @pl.when(k == 0)
        def _():
            h = jnp.dot(x_ref[...].astype(jnp.bfloat16), w1_ref[...],
                        preferred_element_type=jnp.float32)
            a = _bn_relu_fold(h, slab_ref[0], slab_ref[4], inv_b)
            if need_mask:
                a = a * row_mask()      # keep padded rows exactly zero for BN stats
            act_ref[...] = a

        # ---- layers 2..4 (residual), grid steps 1..3 ---------------------------
        @pl.when(k > 0)
        def _():
            xin = act_ref[...]
            h = jnp.dot(xin.astype(jnp.bfloat16), wstack_ref[0],
                        preferred_element_type=jnp.float32)
            a = _bn_relu_fold(h, slab_ref[k], slab_ref[k + 4], inv_b) + xin
            if need_mask:
                a = a * row_mask()
            act_ref[...] = a

        # ---- layer 5 (512 -> 1) as lane reduce (XLU) + sigmoid, last step ------
        @pl.when(k == N_HIDDEN_LAYERS - 1)
        def _():
            x4 = act_ref[...]
            logits = jnp.sum(x4 * slab_ref[8], axis=1, keepdims=True) + b5_ref[0, 0]
            o_ref[...] = jax.nn.sigmoid(logits).astype(o_ref.dtype)

    return kernel


def collision_detection_forward(x, params, *, pad_multiple=16):
    """x: (B, in_node) f32 -> (B, 1) f32 collision probabilities.

    Rows are zero-padded to a multiple of `pad_multiple` (bf16 sublane packing);
    padded rows are masked out of the BatchNorm batch statistics, so results for the
    first B rows match the un-padded model.  For best MXU utilization batch many
    queries per call (multiple of 256 on v6e/v7x, 128 on v5e).
    """
    B, in_node = x.shape
    H = params["wstack"].shape[-1]
    b_pad = ((B + pad_multiple - 1) // pad_multiple) * pad_multiple
    x_pad = jnp.pad(x, ((0, b_pad - B), (0, 0))) if b_pad != B else x

    in_specs = [
        # x, w1, slab: constant block index -> DMA'd once, resident across the grid.
        pl.BlockSpec((b_pad, in_node), lambda k: (0, 0)),
        pl.BlockSpec((in_node, H), lambda k: (0, 0)),
        # w2/w3/w4: one 512 KiB block per layer; block for layer k+1 is prefetched
        # while layer k computes (step 0 reuses block 0 so only w2 is in the prologue).
        pl.BlockSpec((1, H, H), lambda k: (jnp.maximum(k - 1, 0), 0, 0)),
        pl.BlockSpec((9, 1, H), lambda k: (0, 0, 0)),          # BN gammas/betas + w5
        pl.BlockSpec(memory_space=pltpu.MemorySpace.SMEM),      # b5 scalar
    ]
    out_specs = pl.BlockSpec((b_pad, 1), lambda k: (0, 0))

    args = (x_pad, params["w1"], params["wstack"], params["slab"], params["b5"])

    flops = 2 * b_pad * (in_node * H + 3 * H * H + H) + 14 * b_pad * H
    transcendentals = 4 * H + b_pad                 # per-feature rsqrt + sigmoid
    bytes_accessed = sum(int(a.size) * a.dtype.itemsize for a in args) + b_pad * 4

    # ~2 MiB of weights/params + a handful of (b_pad, 512) f32 activation copies.
    # Cap at 48 MiB so large batches still fit v7x's 64 MiB physical VMEM.
    vmem_limit = int(min(48 << 20, max(32 << 20, (2 << 20) + 24 * b_pad * H)))

    out = pl.pallas_call(
        _make_kernel(B, b_pad),
        grid=(N_HIDDEN_LAYERS,),
        out_shape=jax.ShapeDtypeStruct((b_pad, 1), jnp.float32),
        in_specs=in_specs,
        out_specs=out_specs,
        scratch_shapes=[pltpu.VMEM((b_pad, H), jnp.float32)],   # carried activation
        compiler_params=pltpu.CompilerParams(
            dimension_semantics=("arbitrary",),
            vmem_limit_bytes=vmem_limit),
        cost_estimate=pl.CostEstimate(
            flops=flops, transcendentals=transcendentals,
            bytes_accessed=bytes_accessed),
    )(*args)
    return out[:B]


def init_params(key, in_node, hidden=HIDDEN):
    """Deterministic synthetic init. Linear weights stored as (in, out) = W_torch.T."""
    keys = jax.random.split(key, 5)

    def lin(k, fan_in, fan_out):
        bound = 1.0 / jnp.sqrt(float(fan_in))
        kw, kb = jax.random.split(k)
        w = jax.random.uniform(kw, (fan_in, fan_out), jnp.float32, -bound, bound)
        b = jax.random.uniform(kb, (1, fan_out), jnp.float32, -bound, bound)
        return w, b

    p = {}
    ws_bf16 = []
    dims = [(in_node, hidden), (hidden, hidden), (hidden, hidden), (hidden, hidden)]
    for i, (fi, fo) in enumerate(dims, start=1):
        w_f32, b = lin(keys[i - 1], fi, fo)
        p[f"w{i}_f32"] = w_f32                              # reference only
        p[f"b{i}"] = b                                      # reference only (BN cancels)
        p[f"g{i}"] = jnp.ones((1, hidden), jnp.float32)     # BatchNorm1d defaults
        p[f"be{i}"] = jnp.zeros((1, hidden), jnp.float32)
        ws_bf16.append(w_f32.astype(jnp.bfloat16))

    p["w1"] = ws_bf16[0]                                    # (in_node, H) bf16
    p["wstack"] = jnp.stack(ws_bf16[1:], axis=0)            # (3, H, H) bf16

    w5, b5 = lin(keys[4], hidden, 1)
    p["w5_f32"] = w5                                        # (H, 1) reference only
    p["b5"] = b5.reshape(1, 1)                              # SMEM scalar in kernel

    # Packed (9, 1, H) f32 slab: rows 0..3 = g1..g4, 4..7 = be1..be4, 8 = w5 row.
    p["slab"] = jnp.concatenate(
        [p["g1"], p["g2"], p["g3"], p["g4"],
         p["be1"], p["be2"], p["be3"], p["be4"],
         w5.reshape(1, hidden)], axis=0).reshape(9, 1, hidden)
    return p


def matched_reference(x, p):
    """Pure-JAX reference using the same dtypes / folded-BN math as the kernel."""
    inv_b = 1.0 / x.shape[0]
    slab = p["slab"][:, 0, :]

    def layer(xin, w, g, be):
        h = jnp.dot(xin.astype(jnp.bfloat16), w, preferred_element_type=jnp.float32)
        return _bn_relu_fold(h, g, be, inv_b)

    x1 = layer(x, p["w1"], slab[0:1], slab[4:5])
    x2 = layer(x1, p["wstack"][0], slab[1:2], slab[5:6]) + x1
    x3 = layer(x2, p["wstack"][1], slab[2:3], slab[6:7]) + x2
    x4 = layer(x3, p["wstack"][2], slab[3:4], slab[7:8]) + x3
    logits = jnp.sum(x4 * slab[8:9], axis=1, keepdims=True) + p["b5"]
    return jax.nn.sigmoid(logits)


def reference_forward_f32(x, p):
    """Full-f32 PyTorch-style reference (keeps b1..b4, two-pass variance)."""
    def bn_relu(h, g, be):
        mu = jnp.mean(h, axis=0, keepdims=True)
        var = jnp.mean((h - mu) ** 2, axis=0, keepdims=True)
        return jnp.maximum((h - mu) / jnp.sqrt(var + BN_EPS) * g + be, 0.0)

    x1 = bn_relu(x @ p["w1_f32"] + p["b1"], p["g1"], p["be1"])
    x2 = bn_relu(x1 @ p["w2_f32"] + p["b2"], p["g2"], p["be2"]) + x1
    x3 = bn_relu(x2 @ p["w3_f32"] + p["b3"], p["g3"], p["be3"]) + x2
    x4 = bn_relu(x3 @ p["w4_f32"] + p["b4"], p["g4"], p["be4"]) + x3
    return jax.nn.sigmoid(x4 @ p["w5_f32"] + p["b5"])


if __name__ == "__main__":
    IN_NODE = 8
    key = jax.random.PRNGKey(0)
    kx, kp, kx2 = jax.random.split(key, 3)
    params = init_params(kp, IN_NODE)

    # Small demo batch (already a multiple of 16 -> no padding). Real workloads should
    # batch as many collision queries as possible (rows are ~free until the MXU/DMA
    # crossover around B ~ 300-1000).
    B = 48
    x = jax.random.normal(kx, (B, IN_NODE), jnp.float32)
    out = jax.block_until_ready(collision_detection_forward(x, params))
    assert out.shape == (B, 1)
    assert bool(jnp.all(jnp.isfinite(out))), "non-finite output"

    # Tight check vs a pure-JAX pipeline using identical dtypes/ops.
    ref_bf16 = matched_reference(x, params)
    assert jnp.allclose(out, ref_bf16, atol=2e-3, rtol=2e-3), \
        "mismatch vs dtype-matched reference"

    # Semantic check vs the full-f32 PyTorch-style model (incl. the biases the kernel
    # drops — training-mode BN cancels them exactly; slack only for bf16 weights).
    ref_f32 = reference_forward_f32(x, params)
    assert jnp.allclose(out, ref_f32, atol=5e-2, rtol=5e-2), \
        "mismatch vs f32 PyTorch-style reference"

    # Non-multiple-of-16 batch: exercises the zero-pad + BN-stat row-mask path.
    B2 = 30
    x2 = jax.random.normal(kx2, (B2, IN_NODE), jnp.float32)
    out2 = jax.block_until_ready(collision_detection_forward(x2, params))
    assert out2.shape == (B2, 1)
    assert jnp.allclose(out2, matched_reference(x2, params), atol=2e-3, rtol=2e-3), \
        "mismatch vs dtype-matched reference (padded batch)"
    assert jnp.allclose(out2, reference_forward_f32(x2, params), atol=5e-2, rtol=5e-2), \
        "mismatch vs f32 reference (padded batch)"

    print("KERNEL_OK")
</pallas_src>

<mosaic_0001>
module attributes {stable_mosaic.version = 11 : i64} {
  func.func @kernel(%arg0: i32, %arg1: memref<48x8xf32, #tpu.memory_space<vmem>>, %arg2: memref<8x512xbf16, #tpu.memory_space<vmem>>, %arg3: memref<1x512x512xbf16, #tpu.memory_space<vmem>>, %arg4: memref<9x1x512xf32, #tpu.memory_space<vmem>>, %arg5: memref<1x1xf32, #tpu.memory_space<smem>>, %arg6: memref<48x1xf32, #tpu.memory_space<vmem>>, %arg7: memref<48x512xf32, #tpu.memory_space<vmem>>) attributes {dimension_semantics = [#tpu.dimension_semantics<arbitrary>], iteration_bounds = array<i64: 4>, scalar_prefetch = 0 : i64, scratch_operands = 1 : i64, tpu.core_type = #tpu.core_type<tc>, window_params = [{pipeline_mode = #tpu.pipeline_mode<synchronous>, transform_indices = @transform_0, window_bounds = array<i64: 48, 8>}, {pipeline_mode = #tpu.pipeline_mode<synchronous>, transform_indices = @transform_1, window_bounds = array<i64: 8, 512>}, {transform_indices = @transform_2, window_bounds = array<i64: 1, 512, 512>}, {pipeline_mode = #tpu.pipeline_mode<synchronous>, transform_indices = @transform_3, window_bounds = array<i64: 9, 1, 512>}, {transform_indices = @transform_4, window_bounds = array<i64: 1, 1>}, {pipeline_mode = #tpu.pipeline_mode<synchronous>, transform_indices = @transform_5, window_bounds = array<i64: 48, 1>}]} {
    %c0_i32 = arith.constant 0 : i32
    %0 = arith.cmpi eq, %arg0, %c0_i32 : i32
    %1 = arith.extui %0 : i1 to i32
    %c0_i32_0 = arith.constant 0 : i32
    %2 = arith.cmpi ne, %1, %c0_i32_0 : i32
    scf.if %2 {
      %c0 = arith.constant 0 : index
      %c0_4 = arith.constant 0 : index
      %9 = vector.load %arg1[%c0, %c0_4] : memref<48x8xf32, #tpu.memory_space<vmem>>, vector<48x8xf32>
      %10 = arith.truncf %9 : vector<48x8xf32> to vector<48x8xbf16>
      %c0_5 = arith.constant 0 : index
      %c0_6 = arith.constant 0 : index
      %11 = vector.load %arg2[%c0_5, %c0_6] : memref<8x512xbf16, #tpu.memory_space<vmem>>, vector<8x512xbf16>
      %cst = arith.constant dense<0.000000e+00> : vector<48x512xf32>
      %12 = tpu.matmul %10, %11, %cst {dimension_numbers = #tpu.dot_dimension_numbers<[1], [0], [0], [1], [0, 0, 1, 1], [], []>} : vector<48x8xbf16>, vector<8x512xbf16>, vector<48x512xf32> -> vector<48x512xf32>
      %c0_7 = arith.constant 0 : index
      %c0_8 = arith.constant 0 : index
      %c0_9 = arith.constant 0 : index
      %13 = vector.load %arg4[%c0_7, %c0_8, %c0_9] : memref<9x1x512xf32, #tpu.memory_space<vmem>>, vector<1x1x512xf32>
      %14 = vector.shape_cast %13 : vector<1x1x512xf32> to vector<1x512xf32>
      %c4 = arith.constant 4 : index
      %c0_10 = arith.constant 0 : index
      %c0_11 = arith.constant 0 : index
      %15 = vector.load %arg4[%c4, %c0_10, %c0_11] : memref<9x1x512xf32, #tpu.memory_space<vmem>>, vector<1x1x512xf32>
      %16 = vector.shape_cast %15 : vector<1x1x512xf32> to vector<1x512xf32>
      %cst_12 = arith.constant dense<0.000000e+00> : vector<512xf32>
      %17 = vector.multi_reduction <add>, %12, %cst_12 [0] : vector<48x512xf32> to vector<512xf32>
      %18 = vector.shape_cast %17 : vector<512xf32> to vector<1x512xf32>
      %19 = arith.mulf %12, %12 : vector<48x512xf32>
      %cst_13 = arith.constant dense<0.000000e+00> : vector<512xf32>
      %20 = vector.multi_reduction <add>, %19, %cst_13 [0] : vector<48x512xf32> to vector<512xf32>
      %21 = vector.shape_cast %20 : vector<512xf32> to vector<1x512xf32>
      %cst_14 = arith.constant 0.020833334 : f32
      %22 = vector.broadcast %cst_14 : f32 to vector<1x512xf32>
      %23 = arith.mulf %18, %22 : vector<1x512xf32>
      %cst_15 = arith.constant 0.020833334 : f32
      %24 = vector.broadcast %cst_15 : f32 to vector<1x512xf32>
      %25 = arith.mulf %21, %24 : vector<1x512xf32>
      %26 = arith.mulf %23, %23 : vector<1x512xf32>
      %27 = arith.subf %25, %26 : vector<1x512xf32>
      %cst_16 = arith.constant 0.000000e+00 : f32
      %28 = vector.broadcast %cst_16 : f32 to vector<1x512xf32>
      %29 = arith.maximumf %27, %28 : vector<1x512xf32>
      %cst_17 = arith.constant 9.99999974E-6 : f32
      %30 = vector.broadcast %cst_17 : f32 to vector<1x512xf32>
      %31 = arith.addf %29, %30 : vector<1x512xf32>
      %32 = math.rsqrt %31 : vector<1x512xf32>
      %33 = arith.mulf %14, %32 : vector<1x512xf32>
      %34 = arith.mulf %23, %33 : vector<1x512xf32>
      %35 = arith.subf %16, %34 : vector<1x512xf32>
      %36 = vector.broadcast %33 : vector<1x512xf32> to vector<48x512xf32>
      %37 = arith.mulf %12, %36 : vector<48x512xf32>
      %38 = vector.broadcast %35 : vector<1x512xf32> to vector<48x512xf32>
      %39 = arith.addf %37, %38 : vector<48x512xf32>
      %cst_18 = arith.constant 0.000000e+00 : f32
      %40 = vector.broadcast %cst_18 : f32 to vector<48x512xf32>
      %41 = arith.maximumf %39, %40 : vector<48x512xf32>
      %c0_19 = arith.constant 0 : index
      %c0_20 = arith.constant 0 : index
      %42 = vector.load %arg7[%c0_19, %c0_20] : memref<48x512xf32, #tpu.memory_space<vmem>>, vector<48x512xf32>
      tpu.vector_store %arg7[%c0_19, %c0_20], %41 {strides = array<i32>} : memref<48x512xf32, #tpu.memory_space<vmem>>, vector<48x512xf32>,
    } else {
    }
    %c0_i32_1 = arith.constant 0 : i32
    %3 = arith.cmpi sgt, %arg0, %c0_i32_1 : i32
    %4 = arith.extui %3 : i1 to i32
    %c0_i32_2 = arith.constant 0 : i32
    %5 = arith.cmpi ne, %4, %c0_i32_2 : i32
    scf.if %5 {
      %c0 = arith.constant 0 : index
      %c0_4 = arith.constant 0 : index
      %9 = vector.load %arg7[%c0, %c0_4] : memref<48x512xf32, #tpu.memory_space<vmem>>, vector<48x512xf32>
      %10 = arith.truncf %9 : vector<48x512xf32> to vector<48x512xbf16>
      %c0_5 = arith.constant 0 : index
      %c0_6 = arith.constant 0 : index
      %c0_7 = arith.constant 0 : index
      %11 = vector.load %arg3[%c0_5, %c0_6, %c0_7] : memref<1x512x512xbf16, #tpu.memory_space<vmem>>, vector<1x512x512xbf16>
      %12 = vector.shape_cast %11 : vector<1x512x512xbf16> to vector<512x512xbf16>
      %cst = arith.constant dense<0.000000e+00> : vector<48x512xf32>
      %13 = tpu.matmul %10, %12, %cst {dimension_numbers = #tpu.dot_dimension_numbers<[1], [0], [0], [1], [0, 0, 1, 1], [], []>} : vector<48x512xbf16>, vector<512x512xbf16>, vector<48x512xf32> -> vector<48x512xf32>
      %14 = arith.index_cast %arg0 : i32 to index
      %c0_8 = arith.constant 0 : index
      %c0_9 = arith.constant 0 : index
      %15 = vector.load %arg4[%14, %c0_8, %c0_9] : memref<9x1x512xf32, #tpu.memory_space<vmem>>, vector<1x1x512xf32>
      %16 = vector.shape_cast %15 : vector<1x1x512xf32> to vector<1x512xf32>
      %c4_i32 = arith.constant 4 : i32
      %17 = arith.addi %arg0, %c4_i32 : i32
      %18 = arith.index_cast %17 : i32 to index
      %c0_10 = arith.constant 0 : index
      %c0_11 = arith.constant 0 : index
      %19 = vector.load %arg4[%18, %c0_10, %c0_11] : memref<9x1x512xf32, #tpu.memory_space<vmem>>, vector<1x1x512xf32>
      %20 = vector.shape_cast %19 : vector<1x1x512xf32> to vector<1x512xf32>
      %cst_12 = arith.constant dense<0.000000e+00> : vector<512xf32>
      %21 = vector.multi_reduction <add>, %13, %cst_12 [0] : vector<48x512xf32> to vector<512xf32>
      %22 = vector.shape_cast %21 : vector<512xf32> to vector<1x512xf32>
      %23 = arith.mulf %13, %13 : vector<48x512xf32>
      %cst_13 = arith.constant dense<0.000000e+00> : vector<512xf32>
      %24 = vector.multi_reduction <add>, %23, %cst_13 [0] : vector<48x512xf32> to vector<512xf32>
      %25 = vector.shape_cast %24 : vector<512xf32> to vector<1x512xf32>
      %cst_14 = arith.constant 0.020833334 : f32
      %26 = vector.broadcast %cst_14 : f32 to vector<1x512xf32>
      %27 = arith.mulf %22, %26 : vector<1x512xf32>
      %cst_15 = arith.constant 0.020833334 : f32
      %28 = vector.broadcast %cst_15 : f32 to vector<1x512xf32>
      %29 = arith.mulf %25, %28 : vector<1x512xf32>
      %30 = arith.mulf %27, %27 : vector<1x512xf32>
      %31 = arith.subf %29, %30 : vector<1x512xf32>
      %cst_16 = arith.constant 0.000000e+00 : f32
      %32 = vector.broadcast %cst_16 : f32 to vector<1x512xf32>
      %33 = arith.maximumf %31, %32 : vector<1x512xf32>
      %cst_17 = arith.constant 9.99999974E-6 : f32
      %34 = vector.broadcast %cst_17 : f32 to vector<1x512xf32>
      %35 = arith.addf %33, %34 : vector<1x512xf32>
      %36 = math.rsqrt %35 : vector<1x512xf32>
      %37 = arith.mulf %16, %36 : vector<1x512xf32>
      %38 = arith.mulf %27, %37 : vector<1x512xf32>
      %39 = arith.subf %20, %38 : vector<1x512xf32>
      %40 = vector.broadcast %37 : vector<1x512xf32> to vector<48x512xf32>
      %41 = arith.mulf %13, %40 : vector<48x512xf32>
      %42 = vector.broadcast %39 : vector<1x512xf32> to vector<48x512xf32>
      %43 = arith.addf %41, %42 : vector<48x512xf32>
      %cst_18 = arith.constant 0.000000e+00 : f32
      %44 = vector.broadcast %cst_18 : f32 to vector<48x512xf32>
      %45 = arith.maximumf %43, %44 : vector<48x512xf32>
      %46 = arith.addf %45, %9 : vector<48x512xf32>
      %c0_19 = arith.constant 0 : index
      %c0_20 = arith.constant 0 : index
      %47 = vector.load %arg7[%c0_19, %c0_20] : memref<48x512xf32, #tpu.memory_space<vmem>>, vector<48x512xf32>
      tpu.vector_store %arg7[%c0_19, %c0_20], %46 {strides = array<i32>} : memref<48x512xf32, #tpu.memory_space<vmem>>, vector<48x512xf32>,
    } else {
    }
    %c3_i32 = arith.constant 3 : i32
    %6 = arith.cmpi eq, %arg0, %c3_i32 : i32
    %7 = arith.extui %6 : i1 to i32
    %c0_i32_3 = arith.constant 0 : i32
    %8 = arith.cmpi ne, %7, %c0_i32_3 : i32
    scf.if %8 {
      %c0 = arith.constant 0 : index
      %c0_4 = arith.constant 0 : index
      %9 = vector.load %arg7[%c0, %c0_4] : memref<48x512xf32, #tpu.memory_space<vmem>>, vector<48x512xf32>
      %c8 = arith.constant 8 : index
      %c0_5 = arith.constant 0 : index
      %c0_6 = arith.constant 0 : index
      %10 = vector.load %arg4[%c8, %c0_5, %c0_6] : memref<9x1x512xf32, #tpu.memory_space<vmem>>, vector<1x1x512xf32>
      %11 = vector.shape_cast %10 : vector<1x1x512xf32> to vector<1x512xf32>
      %12 = vector.broadcast %11 : vector<1x512xf32> to vector<48x512xf32>
      %13 = arith.mulf %9, %12 : vector<48x512xf32>
      %cst = arith.constant dense<0.000000e+00> : vector<48xf32>
      %14 = vector.multi_reduction <add>, %13, %cst [1] : vector<48x512xf32> to vector<48xf32>
      %15 = vector.shape_cast %14 : vector<48xf32> to vector<48x1xf32>
      %c0_7 = arith.constant 0 : index
      %c0_8 = arith.constant 0 : index
      %16 = memref.load %arg5[%c0_7, %c0_8] : memref<1x1xf32, #tpu.memory_space<smem>>
      %17 = vector.broadcast %16 : f32 to vector<48x1xf32>
      %18 = arith.addf %15, %17 : vector<48x1xf32>
      %19 = arith.negf %18 : vector<48x1xf32>
      %20 = math.exp %19 : vector<48x1xf32>
      %cst_9 = arith.constant 1.000000e+00 : f32
      %21 = vector.broadcast %cst_9 : f32 to vector<48x1xf32>
      %22 = arith.addf %21, %20 : vector<48x1xf32>
      %23 = arith.divf %21, %22 : vector<48x1xf32>
      %c0_10 = arith.constant 0 : index
      %c0_11 = arith.constant 0 : index
      %24 = vector.load %arg6[%c0_10, %c0_11] : memref<48x1xf32, #tpu.memory_space<vmem>>, vector<48x1xf32>
      tpu.vector_store %arg6[%c0_10, %c0_11], %23 {strides = array<i32>} : memref<48x1xf32, #tpu.memory_space<vmem>>, vector<48x1xf32>,
    } else {
    }
    return
  }
  func.func @transform_0(%arg0: i32) -> (i32, i32) {
    %c0_i32 = arith.constant 0 : i32
    %c0_i32_0 = arith.constant 0 : i32
    %c0_i32_1 = arith.constant 0 : i32
    return %c0_i32, %c0_i32_0 : i32, i32
  }
  func.func @transform_1(%arg0: i32) -> (i32, i32) {
    %c0_i32 = arith.constant 0 : i32
    %c0_i32_0 = arith.constant 0 : i32
    %c0_i32_1 = arith.constant 0 : i32
    return %c0_i32, %c0_i32_0 : i32, i32
  }
  func.func @transform_2(%arg0: i32) -> (i32, i32, i32) {
    %c1_i32 = arith.constant 1 : i32
    %0 = arith.subi %arg0, %c1_i32 : i32
    %c0_i32 = arith.constant 0 : i32
    %1 = arith.maxsi %0, %c0_i32 : i32
    %c0_i32_0 = arith.constant 0 : i32
    %c0_i32_1 = arith.constant 0 : i32
    %c0_i32_2 = arith.constant 0 : i32
    return %1, %c0_i32_0, %c0_i32_1 : i32, i32, i32
  }
  func.func @transform_3(%arg0: i32) -> (i32, i32, i32) {
    %c0_i32 = arith.constant 0 : i32
    %c0_i32_0 = arith.constant 0 : i32
    %c0_i32_1 = arith.constant 0 : i32
    %c0_i32_2 = arith.constant 0 : i32
    return %c0_i32, %c0_i32_0, %c0_i32_1 : i32, i32, i32
  }
  func.func @transform_4(%arg0: i32) -> (i32, i32) {
    %c0_i32 = arith.constant 0 : i32
    %c0_i32_0 = arith.constant 0 : i32
    %c0_i32_1 = arith.constant 0 : i32
    return %c0_i32, %c0_i32_0 : i32, i32
  }
  func.func @transform_5(%arg0: i32) -> (i32, i32) {
    %c0_i32 = arith.constant 0 : i32
    %c0_i32_0 = arith.constant 0 : i32
    %c0_i32_1 = arith.constant 0 : i32
    return %c0_i32, %c0_i32_0 : i32, i32
  }
}

</mosaic_0001>

<llo_original>
// kernel: tpu_custom_call.1
$region0: #{tpu_custom_call.1}
  #allocation0 [shape = 'u32[]', space=smem, size = 0x4, offset = 0x4, fixed_abs, tag = 'smem constant byte address 0x4 - core index']
  #allocation1 [shape = 'u32[144,128]{1,0:T(1,128)}', space=vmem, size = 0x12000, scoped, tag = 'internal scratch']
  #allocation2 [shape = 'f32[48,512]{1,0:T(8,128)}', space=vmem, size = 0x18000, scoped, tag = 'scratch operand']
  #allocation3 [shape = 'f32[1,1]{1,0:T(1,128)S(6)}', space=smem, size = 0x200, scoped, tag = 'scoped memory for tpu_custom_call.1']
  %s0 = inlined_call_operand.vmem [shape: f32[48,8], index: 0, kind: input, shape index: {}]
  %s1 = inlined_call_operand.hbm [shape: bf16[8,512], index: 1, kind: input, shape index: {}]
  %s2 = inlined_call_operand.hbm [shape: bf16[3,512,512], index: 2, kind: input, shape index: {}]
  %s3 = inlined_call_operand.hbm [shape: f32[9,1,512], index: 3, kind: input, shape index: {}]
  %s4 = inlined_call_operand.<no memory space> [shape: f32[1,1], index: 4, kind: input, shape index: {}]
  %s5 = inlined_call_operand.vmem [shape: f32[48,1], index: 5, kind: output, shape index: {}]
  %s6 = sld [smem:[#allocation0]]
  $region77: #{tpu_custom_call.1} parent=0
    _
  %s8 = ssub.s32 1, %s6
  %s9 = scalar_select 0, %s8, %s6
  %10 = sst [smem:[#allocation3]] %s4
  $region1: #{tpu_custom_call.1} parent=0
    #allocation4 [shape = 'u8[8192]{0}', space=vmem, size = 0x2000, scoped, tag = 'input window, operand 1, single buffered']
    #allocation5 [shape = 's32[2]{0}', space=sflag, size = 0x8, scoped, tag = 'scoped memory for tpu_custom_call.1']
    #allocation6 [shape = 'u8[1048576]{0}', space=vmem, size = 0x100000, scoped, tag = 'input window, operand 2']
    #allocation7 [shape = 's32[2]{0}', space=sflag, size = 0x8, scoped, tag = 'scoped memory for tpu_custom_call.1']
    #allocation8 [shape = 'u8[18432]{0}', space=vmem, size = 0x4800, scoped, tag = 'input window, operand 3, single buffered']
    %11 = vsyncpa [#allocation5], 0
    %12 = vsyncpa [#allocation7], 0
    %s13 = scalar_lea.sflag [#allocation7], 1
    %14 = vsyncpa %s13, 0
    loop: start=0, step=1, limit=6
    $region2: #{tpu_custom_call.1} parent=1 // loop_pre_header
      _
    $region3: #{tpu_custom_call.1} parent=1 // loop_header
      %s16 = sphi 0, %s20
      %p17 = scmp.ge.s32.totalorder %s16, 6
      %s24 = sphi 0, %s24
      %s26 = sphi 0, %s24
      %s27 = sphi 0, %s26
      %s41 = sphi 0, %s27
      %s45 = sphi 0, %s45
      %s47 = sphi 0, %s45
      %s48 = sphi 0, %s47
      %s62 = sphi 0, %s48
      %s74 = sphi 0, %s76
      %s77 = sphi 0, %s74
      %s78 = sphi 0, %s77
      %s94 = sphi 0, %s78
      %s98 = sphi 0, %s98
      %s100 = sphi 0, %s98
      %s101 = sphi 0, %s100
      %s115 = sphi 0, %s101
      %s119 = sphi 0, %s119
      %s121 = sphi 0, %s119
      %s122 = sphi 0, %s121
      %s136 = sphi 0, %s122
      %s140 = sphi 0, %s140
      %s142 = sphi 0, %s140
      %s143 = sphi 0, %s142
      %s157 = sphi 0, %s143
    $region4: #{tpu_custom_call.1} parent=1 // loop_header_branch
      %19 = sbr.rel (%p17) target = $region8
    $region5: #{tpu_custom_call.1} parent=1 // loop_body
      %s21 = ssub.s32 %s16, 1
      %s22 = ssub.s32 %s16, 2
      %s23 = sadd.s32 %s16, 1
      %s25 = sadd.s32 %s24, 1
      %p28 = scmp.eq.s32.totalorder %s16, 3
      %p29 = scmp.ne.s32.totalorder %s24, %s26
      %p30 = scmp.eq.s32.totalorder %s16, 0
      %p31 = por %p29, %p30
      %p32 = scmp.ne.s32.totalorder %s24, %s26
      %p33 = scmp.eq.s32.totalorder %s21, 3
      %p34 = por %p32, %p33
      %p35 = scmp.ne.s32.totalorder %s26, %s27
      %p36 = scmp.eq.s32.totalorder %s21, 0
      %p37 = por %p35, %p36
      %p38 = scmp.ne.s32.totalorder %s26, %s27
      %p39 = scmp.eq.s32.totalorder %s22, 3
      %p40 = por %p38, %p39
      %p42 = scmp.ne.s32.totalorder %s27, %s41
      %p43 = scmp.eq.s32.totalorder %s22, 0
      %p44 = por %p42, %p43
      %s46 = sadd.s32 %s45, 1
      %p49 = scmp.eq.s32.totalorder %s16, 3
      %p50 = scmp.ne.s32.totalorder %s45, %s47
      %p51 = scmp.eq.s32.totalorder %s16, 0
      %p52 = por %p50, %p51
      %p53 = scmp.ne.s32.totalorder %s45, %s47
      %p54 = scmp.eq.s32.totalorder %s21, 3
      %p55 = por %p53, %p54
      %p56 = scmp.ne.s32.totalorder %s47, %s48
      %p57 = scmp.eq.s32.totalorder %s21, 0
      %p58 = por %p56, %p57
      %p59 = scmp.ne.s32.totalorder %s47, %s48
      %p60 = scmp.eq.s32.totalorder %s22, 3
      %p61 = por %p59, %p60
      %p63 = scmp.ne.s32.totalorder %s48, %s62
      %p64 = scmp.eq.s32.totalorder %s22, 0
      %p65 = por %p63, %p64
      %s66 = ssub.s32 %s16, 1
      %p67 = scmp.gt.s32.totalorder %s66, 0
      %s68 = scalar_select %p67, %s66, 0
      %s69 = ssub.s32 %s23, 1
      %p70 = scmp.gt.s32.totalorder %s69, 0
      %s71 = scalar_select %p70, %s69, 0
      %s72 = ssub.s32 %s68, %s71
      %p73 = scmp.eq.s32.totalorder %s72, 0
      %s75 = sadd.s32 %s74, 1
      %s76 = scalar_select %p73, %s74, %s75
      %p79 = pneg %p73
      %p80 = scmp.eq.s32.totalorder %s16, 3
      %p81 = por %p79, %p80
      %p82 = scmp.ne.s32.totalorder %s74, %s77
      %p83 = scmp.eq.s32.totalorder %s16, 0
      %p84 = por %p82, %p83
      %p85 = scmp.ne.s32.totalorder %s74, %s77
      %p86 = scmp.eq.s32.totalorder %s21, 3
      %p87 = por %p85, %p86
      %p88 = scmp.ne.s32.totalorder %s77, %s78
      %p89 = scmp.eq.s32.totalorder %s21, 0
      %p90 = por %p88, %p89
      %p91 = scmp.ne.s32.totalorder %s77, %s78
      %p92 = scmp.eq.s32.totalorder %s22, 3
      %p93 = por %p91, %p92
      %p95 = scmp.ne.s32.totalorder %s78, %s94
      %p96 = scmp.eq.s32.totalorder %s22, 0
      %p97 = por %p95, %p96
      %s99 = sadd.s32 %s98, 1
      %p102 = scmp.eq.s32.totalorder %s16, 3
      %p103 = scmp.ne.s32.totalorder %s98, %s100
      %p104 = scmp.eq.s32.totalorder %s16, 0
      %p105 = por %p103, %p104
      %p106 = scmp.ne.s32.totalorder %s98, %s100
      %p107 = scmp.eq.s32.totalorder %s21, 3
      %p108 = por %p106, %p107
      %p109 = scmp.ne.s32.totalorder %s100, %s101
      %p110 = scmp.eq.s32.totalorder %s21, 0
      %p111 = por %p109, %p110
      %p112 = scmp.ne.s32.totalorder %s100, %s101
      %p113 = scmp.eq.s32.totalorder %s22, 3
      %p114 = por %p112, %p113
      %p116 = scmp.ne.s32.totalorder %s101, %s115
      %p117 = scmp.eq.s32.totalorder %s22, 0
      %p118 = por %p116, %p117
      %s120 = sadd.s32 %s119, 1
      %p123 = scmp.eq.s32.totalorder %s16, 3
      %p124 = scmp.ne.s32.totalorder %s119, %s121
      %p125 = scmp.eq.s32.totalorder %s16, 0
      %p126 = por %p124, %p125
      %p127 = scmp.ne.s32.totalorder %s119, %s121
      %p128 = scmp.eq.s32.totalorder %s21, 3
      %p129 = por %p127, %p128
      %p130 = scmp.ne.s32.totalorder %s121, %s122
      %p131 = scmp.eq.s32.totalorder %s21, 0
      %p132 = por %p130, %p131
      %p133 = scmp.ne.s32.totalorder %s121, %s122
      %p134 = scmp.eq.s32.totalorder %s22, 3
      %p135 = por %p133, %p134
      %p137 = scmp.ne.s32.totalorder %s122, %s136
      %p138 = scmp.eq.s32.totalorder %s22, 0
      %p139 = por %p137, %p138
      %s141 = sadd.s32 %s140, 1
      %p144 = scmp.eq.s32.totalorder %s16, 3
      %p145 = scmp.ne.s32.totalorder %s140, %s142
      %p146 = scmp.eq.s32.totalorder %s16, 0
      %p147 = por %p145, %p146
      %p148 = scmp.ne.s32.totalorder %s140, %s142
      %p149 = scmp.eq.s32.totalorder %s21, 3
      %p150 = por %p148, %p149
      %p151 = scmp.ne.s32.totalorder %s142, %s143
      %p152 = scmp.eq.s32.totalorder %s21, 0
      %p153 = por %p151, %p152
      %p154 = scmp.ne.s32.totalorder %s142, %s143
      %p155 = scmp.eq.s32.totalorder %s22, 3
      %p156 = por %p154, %p155
      %p158 = scmp.ne.s32.totalorder %s143, %s157
      %p159 = scmp.eq.s32.totalorder %s22, 0
      %p160 = por %p158, %p159
      %p161 = scmp.le.s32.totalorder 1, %s16
      %p162 = scmp.lt.s32.totalorder %s16, 5
      %p163 = pnand %p161, %p162
      %p164 = pneg %p163
      // Predicated region
      $region9: #{tpu_custom_call.1} parent=5 // pred_check
        _
      $region10: #{tpu_custom_call.1} parent=5 // pred_check_branch
        %166 = sbr.rel (%p163) target = $region12
      $region11: #{tpu_custom_call.1} parent=5 // pred_region
        %s167 = ssub.s32 %s16, 1
        // Predicated region
        $region13: #{tpu_custom_call.1} parent=11 // pred_check
          %p168 = pneg %p37
        $region14: #{tpu_custom_call.1} parent=11 // pred_check_branch
          %170 = sbr.rel (%p168) target = $region16
        $region15: #{tpu_custom_call.1} parent=11 // pred_region
          _
        $region16: #{tpu_custom_call.1} parent=11 // pred_fallthru
          _
        // Predicated region
        $region17: #{tpu_custom_call.1} parent=11 // pred_check
          %p171 = pneg %p58
        $region18: #{tpu_custom_call.1} parent=11 // pred_check_branch
          %173 = sbr.rel (%p171) target = $region20
        $region19: #{tpu_custom_call.1} parent=11 // pred_region
          %s175 = ssub.s32 256, 256
          %176 = vsyncadd [#allocation5], %s175
          %s178 = sshll.u32 [#allocation4], 4
          %s179 = int_to_ptr.vmem [resolvable:$true] %s178
          %181 = dma.hbm_to_vmem [thread:$0]  %s1, 256, %s179, [#allocation5]
        $region20: #{tpu_custom_call.1} parent=11 // pred_fallthru
          _
        // Predicated region
        $region21: #{tpu_custom_call.1} parent=11 // pred_check
          %p182 = pneg %p111
        $region22: #{tpu_custom_call.1} parent=11 // pred_check_branch
          %184 = sbr.rel (%p182) target = $region24
        $region23: #{tpu_custom_call.1} parent=11 // pred_region
          %s186 = ssub.s32 576, 576
          %187 = vsyncadd [#allocation7], %s186
          %s188 = sshll.u32 [#allocation8], 4
          %s189 = int_to_ptr.vmem [resolvable:$true] %s188
          %194 = dma.hbm_to_vmem [thread:$0]  %s3, 576, %s189, [#allocation7], 64, 64, 4
        $region24: #{tpu_custom_call.1} parent=11 // pred_fallthru
          _
        // Predicated region
        $region25: #{tpu_custom_call.1} parent=11 // pred_check
          %p195 = pneg %p132
        $region26: #{tpu_custom_call.1} parent=11 // pred_check_branch
          %197 = sbr.rel (%p195) target = $region28
        $region27: #{tpu_custom_call.1} parent=11 // pred_region
          _
        $region28: #{tpu_custom_call.1} parent=11 // pred_fallthru
          _
      $region12: #{tpu_custom_call.1} parent=5 // pred_fallthru
        _
      %p198 = scmp.lt.s32.totalorder %s16, 4
      // Predicated region
      $region29: #{tpu_custom_call.1} parent=5 // pred_check
        %p199 = pneg %p198
      $region30: #{tpu_custom_call.1} parent=5 // pred_check_branch
        %201 = sbr.rel (%p199) target = $region32
      $region31: #{tpu_custom_call.1} parent=5 // pred_region
        // Predicated region
        $region33: #{tpu_custom_call.1} parent=31 // pred_check
          %p202 = pneg %p84
        $region34: #{tpu_custom_call.1} parent=31 // pred_check_branch
          %204 = sbr.rel (%p202) target = $region36
        $region35: #{tpu_custom_call.1} parent=31 // pred_region
          %s205 = sand.u32 %s16, 1
          %s206 = scalar_lea.sflag [#allocation7], %s205
          %s207 = sand.u32 %s74, 1
          %s208 = smul.addr %s207, 1024
          %s209 = scalar_lea.vmem [#allocation6], %s208
          %s210 = ssub.s32 %s16, 1
          %p211 = scmp.gt.s32.totalorder %s210, 0
          %s212 = scalar_select %p211, %s210, 0
          %s214 = ssub.s32 16384, 16384
          %215 = vsyncadd %s206, %s214
          %s216 = smul.addr %s212, 256
          %s217 = smul.addr %s216, 64
          %s218 = scalar_lea.hbm %s2, %s217
          %s219 = sshll.u32 %s209, 4
          %s220 = int_to_ptr.vmem [resolvable:$true] %s219
          %225 = dma.hbm_to_vmem [thread:$0]  %s218, 16384, %s220, %s206, 256, 256, 16
        $region36: #{tpu_custom_call.1} parent=31 // pred_fallthru
          _
      $region32: #{tpu_custom_call.1} parent=5 // pred_fallthru
        _
      %p226 = scmp.le.s32.totalorder 1, %s16
      %p227 = scmp.lt.s32.totalorder %s16, 5
      %p228 = pnand %p226, %p227
      %p229 = pneg %p228
      // Predicated region
      $region37: #{tpu_custom_call.1} parent=5 // pred_check
        _
      $region38: #{tpu_custom_call.1} parent=5 // pred_check_branch
        %231 = sbr.rel (%p228) target = $region40
      $region39: #{tpu_custom_call.1} parent=5 // pred_region
        %s232 = ssub.s32 %s16, 1
        // Predicated region
        $region41: #{tpu_custom_call.1} parent=39 // pred_check
          %p233 = pneg %p58
        $region42: #{tpu_custom_call.1} parent=39 // pred_check_branch
          %235 = sbr.rel (%p233) target = $region44
        $region43: #{tpu_custom_call.1} parent=39 // pred_region
          %236 = dma.done [#allocation5], 256
        $region44: #{tpu_custom_call.1} parent=39 // pred_fallthru
          _
        %s237 = sand.u32 %s21, 1
        %s238 = scalar_lea.sflag [#allocation7], %s237
        %s239 = sand.u32 %s77, 1
        %s240 = smul.addr %s239, 1024
        %s241 = scalar_lea.vmem [#allocation6], %s240
        // Predicated region
        $region45: #{tpu_custom_call.1} parent=39 // pred_check
          %p242 = pneg %p90
        $region46: #{tpu_custom_call.1} parent=39 // pred_check_branch
          %244 = sbr.rel (%p242) target = $region48
        $region47: #{tpu_custom_call.1} parent=39 // pred_region
          %245 = dma.done %s238, 16384
        $region48: #{tpu_custom_call.1} parent=39 // pred_fallthru
          _
        // Predicated region
        $region49: #{tpu_custom_call.1} parent=39 // pred_check
          %p246 = pneg %p111
        $region50: #{tpu_custom_call.1} parent=39 // pred_check_branch
          %248 = sbr.rel (%p246) target = $region52
        $region51: #{tpu_custom_call.1} parent=39 // pred_region
          %249 = dma.done [#allocation7], 576
        $region52: #{tpu_custom_call.1} parent=39 // pred_fallthru
          _
        %p250 = pneg %p37
        %p251 = pneg %p34
        %p252 = pneg %p58
        %p253 = pneg %p55
        %s254 = sand.u32 %s21, 1
        %s255 = scalar_lea.sflag [#allocation7], %s254
        %s256 = sand.u32 %s77, 1
        %s257 = smul.addr %s256, 1024
        %s258 = scalar_lea.vmem [#allocation6], %s257
        %p259 = pneg %p90
        %p260 = pneg %p87
        %p261 = pneg %p111
        %p262 = pneg %p108
        %p263 = pneg %p132
        %p264 = pneg %p129
        %p265 = pneg %p153
        %p266 = pneg %p150
        %s267 = ssub.s32 %s21, 1
        %p268 = scmp.gt.s32.totalorder %s267, 0
        %s269 = scalar_select %p268, %s267, 0
        %p271 = scmp.eq.s32.totalorder %s21, 0
        // Predicated region
        $region53: #{tpu_custom_call.1} parent=39 // pred_check
          %p272 = pneg %p271
        $region54: #{tpu_custom_call.1} parent=39 // pred_check_branch
          %274 = sbr.rel (%p272) target = $region56
        $region55: #{tpu_custom_call.1} parent=39 // pred_region
          %v275 = vld [vmem:[%s0] sm:$0xff]
          %v276 = vld [vmem:[%s0 + $0x8] sm:$0xff]
          %v277 = vld [vmem:[%s0 + $0x10] sm:$0xff]
          %v278 = vld [vmem:[%s0 + $0x18] sm:$0xff]
          %v279 = vld [vmem:[%s0 + $0x20] sm:$0xff]
          %v280 = vld [vmem:[%s0 + $0x28] sm:$0xff]
          %v281 = vpack.c.bf16 %v276, %v275
          %v282 = vpack.c.bf16 %v278, %v277
          %v283 = vpack.c.bf16 %v280, %v279
          %v284 = vld [vmem:[#allocation4] sm:$0xff]
          %v285 = vld [vmem:[#allocation4 + $0x8] sm:$0xff]
          %v288 = vunpack.c.l.b16 %v284
          %v289 = vunpack.c.h.b16 %v284
          %v290 = vunpack.c.l.b16 %v285
          %v291 = vunpack.c.h.b16 %v285
          %v292 = vpack.c.b16 %v288, %v288
          %v293 = vpack.c.b16 %v289, %v289
          %v294 = vpack.c.b16 %v290, %v290
          %v295 = vpack.c.b16 %v291, %v291
          %vm296 = vcmask 64512
          %v298 = vsel %vm296, %v281, 0
          %v301 = vsel %vm296, %v282, 0
          %v304 = vsel %vm296, %v283, 0
          %vm306 = vcmask 1043456
          %v308 = vsel %vm306, %v292, 0
          %v311 = vsel %vm306, %v293, 0
          %v314 = vsel %vm306, %v294, 0
          %v317 = vsel %vm306, %v295, 0
          %319 = vmatprep.subr.bf16.mxu0 0
          %320 = vmatpush1.bf16.msra.mxu0 0
          %321 = vmatprep.subr.bf16.mxu0 0
          %322 = vmatpush1.bf16.msra.mxu0 0
          %323 = vmatprep.subr.bf16.mxu0 0
          %324 = vmatpush1.bf16.msra.mxu0 0
          %325 = vmatprep.subr.bf16.mxu0 0
          %326 = vmatpush1.bf16.msra.mxu0 0
          %327 = vmatprep.subr.bf16.mxu0 0
          %328 = vmatpush1.bf16.msra.mxu0 0
          %329 = vmatprep.subr.bf16.mxu0 0
          %330 = vmatpush1.bf16.msra.mxu0 0
          %331 = vmatprep.subr.bf16.mxu0 0
          %332 = vmatpush1.bf16.msra.mxu0 0
          %333 = vmatprep.subr.bf16.mxu0 %v311
          %334 = vmatpush1.bf16.msra.mxu0 %v308
          %335 = vmatprep.subr.bf16.mxu0 0
          %336 = vmatpush2.bf16.msra.mxu0 0
          %337 = vmatprep.subr.bf16.mxu0 0
          %338 = vmatpush2.bf16.msra.mxu0 0
          %339 = vmatprep.subr.bf16.mxu0 0
          %340 = vmatpush2.bf16.msra.mxu0 0
          %341 = vmatprep.subr.bf16.mxu0 0
          %342 = vmatpush2.bf16.msra.mxu0 0
          %343 = vmatprep.subr.bf16.mxu0 0
          %344 = vmatpush2.bf16.msra.mxu0 0
          %345 = vmatprep.subr.bf16.mxu0 0
          %346 = vmatpush2.bf16.msra.mxu0 0
          %347 = vmatprep.subr.bf16.mxu0 0
          %348 = vmatpush2.bf16.msra.mxu0 0
          %349 = vmatprep.subr.bf16.mxu0 0
          %350 = vmatpush2.bf16.msra.mxu0 0
          %351 = vmatprep.mubr.bf16.mxu0 0
          %352 = vmatmul.mubr.bf16.gmra.mxu0 %v298
          %v353 = vpop.f32.mrf.mxu0
          %v354 = vadd.f32 0.0, %v353
          %v355 = vpop.f32.mrf.mxu0
          %v356 = vadd.f32 0.0, %v355
          %v357 = vpop.f32.mrf.mxu0
          %v358 = vadd.f32 0.0, %v357
          %v359 = vpop.f32.mrf.mxu0
          %v360 = vadd.f32 0.0, %v359
          %361 = vmatprep.mubr.bf16.mxu0 0
          %362 = vmatmul.mubr.bf16.gmra.mxu0 %v301
          %v363 = vpop.f32.mrf.mxu0
          %v364 = vadd.f32 0.0, %v363
          %v365 = vpop.f32.mrf.mxu0
          %v366 = vadd.f32 0.0, %v365
          %v367 = vpop.f32.mrf.mxu0
          %v368 = vadd.f32 0.0, %v367
          %v369 = vpop.f32.mrf.mxu0
          %v370 = vadd.f32 0.0, %v369
          %371 = vmatprep.mubr.bf16.mxu0 0
          %372 = vmatmul.mubr.bf16.gmra.mxu0 %v304
          %v373 = vpop.f32.mrf.mxu0
          %v374 = vadd.f32 0.0, %v373
          %v375 = vpop.f32.mrf.mxu0
          %v376 = vadd.f32 0.0, %v375
          %v377 = vpop.f32.mrf.mxu0
          %v378 = vadd.f32 0.0, %v377
          %v379 = vpop.f32.mrf.mxu0
          %v380 = vadd.f32 0.0, %v379
          %381 = vdwg.mxu0
          %382 = vmatprep.subr.bf16.mxu0 0
          %383 = vmatpush1.bf16.msra.mxu0 0
          %384 = vmatprep.subr.bf16.mxu0 0
          %385 = vmatpush1.bf16.msra.mxu0 0
          %386 = vmatprep.subr.bf16.mxu0 0
          %387 = vmatpush1.bf16.msra.mxu0 0
          %388 = vmatprep.subr.bf16.mxu0 0
          %389 = vmatpush1.bf16.msra.mxu0 0
          %390 = vmatprep.subr.bf16.mxu0 0
          %391 = vmatpush1.bf16.msra.mxu0 0
          %392 = vmatprep.subr.bf16.mxu0 0
          %393 = vmatpush1.bf16.msra.mxu0 0
          %394 = vmatprep.subr.bf16.mxu0 0
          %395 = vmatpush1.bf16.msra.mxu0 0
          %396 = vmatprep.subr.bf16.mxu0 %v317
          %397 = vmatpush1.bf16.msra.mxu0 %v314
          %398 = vmatprep.subr.bf16.mxu0 0
          %399 = vmatpush2.bf16.msra.mxu0 0
          %400 = vmatprep.subr.bf16.mxu0 0
          %401 = vmatpush2.bf16.msra.mxu0 0
          %402 = vmatprep.subr.bf16.mxu0 0
          %403 = vmatpush2.bf16.msra.mxu0 0
          %404 = vmatprep.subr.bf16.mxu0 0
          %405 = vmatpush2.bf16.msra.mxu0 0
          %406 = vmatprep.subr.bf16.mxu0 0
          %407 = vmatpush2.bf16.msra.mxu0 0
          %408 = vmatprep.subr.bf16.mxu0 0
          %409 = vmatpush2.bf16.msra.mxu0 0
          %410 = vmatprep.subr.bf16.mxu0 0
          %411 = vmatpush2.bf16.msra.mxu0 0
          %412 = vmatprep.subr.bf16.mxu0 0
          %413 = vmatpush2.bf16.msra.mxu0 0
          %414 = vmatprep.mubr.bf16.mxu0 0
          %415 = vmatmul.mubr.bf16.gmra.mxu0 %v298
          %v416 = vpop.f32.mrf.mxu0
          %v417 = vadd.f32 0.0, %v416
          %v418 = vpop.f32.mrf.mxu0
          %v419 = vadd.f32 0.0, %v418
          %v420 = vpop.f32.mrf.mxu0
          %v421 = vadd.f32 0.0, %v420
          %v422 = vpop.f32.mrf.mxu0
          %v423 = vadd.f32 0.0, %v422
          %424 = vmatprep.mubr.bf16.mxu0 0
          %425 = vmatmul.mubr.bf16.gmra.mxu0 %v301
          %v426 = vpop.f32.mrf.mxu0
          %v427 = vadd.f32 0.0, %v426
          %v428 = vpop.f32.mrf.mxu0
          %v429 = vadd.f32 0.0, %v428
          %v430 = vpop.f32.mrf.mxu0
          %v431 = vadd.f32 0.0, %v430
          %v432 = vpop.f32.mrf.mxu0
          %v433 = vadd.f32 0.0, %v432
          %434 = vmatprep.mubr.bf16.mxu0 0
          %435 = vmatmul.mubr.bf16.gmra.mxu0 %v304
          %v436 = vpop.f32.mrf.mxu0
          %v437 = vadd.f32 0.0, %v436
          %v438 = vpop.f32.mrf.mxu0
          %v439 = vadd.f32 0.0, %v438
          %v440 = vpop.f32.mrf.mxu0
          %v441 = vadd.f32 0.0, %v440
          %v442 = vpop.f32.mrf.mxu0
          %v443 = vadd.f32 0.0, %v442
          %444 = vdwg.mxu0
          %v445 = vld [vmem:[#allocation8] sm:$0xf]
          %s446 = scalar_lea.vmem [#allocation8], 16
          %v447 = vld [vmem:[%s446] sm:$0xf]
          %v448 = vadd.f32 %v354, %v358
          %v449 = vadd.f32 %v448, %v364
          %v450 = vadd.f32 %v449, %v368
          %v451 = vadd.f32 %v450, %v374
          %v452 = vadd.f32 %v451, %v378
          %v453 = vrot.slane %v452, 4
          %v454 = vadd.f32 %v452, %v453
          %v455 = vrot.slane %v454, 2
          %v456 = vadd.f32 %v454, %v455
          %v457 = vrot.slane %v456, 1
          %v458 = vadd.f32 %v456, %v457
          %v459 = vadd.f32 %v356, %v360
          %v460 = vadd.f32 %v459, %v366
          %v461 = vadd.f32 %v460, %v370
          %v462 = vadd.f32 %v461, %v376
          %v463 = vadd.f32 %v462, %v380
          %v464 = vrot.slane %v463, 4
          %v465 = vadd.f32 %v463, %v464
          %v466 = vrot.slane %v465, 2
          %v467 = vadd.f32 %v465, %v466
          %v468 = vrot.slane %v467, 1
          %v469 = vadd.f32 %v467, %v468
          %v470 = vadd.f32 %v417, %v421
          %v471 = vadd.f32 %v470, %v427
          %v472 = vadd.f32 %v471, %v431
          %v473 = vadd.f32 %v472, %v437
          %v474 = vadd.f32 %v473, %v441
          %v475 = vrot.slane %v474, 4
          %v476 = vadd.f32 %v474, %v475
          %v477 = vrot.slane %v476, 2
          %v478 = vadd.f32 %v476, %v477
          %v479 = vrot.slane %v478, 1
          %v480 = vadd.f32 %v478, %v479
          %v481 = vadd.f32 %v419, %v423
          %v482 = vadd.f32 %v481, %v429
          %v483 = vadd.f32 %v482, %v433
          %v484 = vadd.f32 %v483, %v439
          %v485 = vadd.f32 %v484, %v443
          %v486 = vrot.slane %v485, 4
          %v487 = vadd.f32 %v485, %v486
          %v488 = vrot.slane %v487, 2
          %v489 = vadd.f32 %v487, %v488
          %v490 = vrot.slane %v489, 1
          %v491 = vadd.f32 %v489, %v490
          %v492 = vmul.f32 %v354, %v354
          %v493 = vmul.f32 %v356, %v356
          %v494 = vmul.f32 %v417, %v417
          %v495 = vmul.f32 %v419, %v419
          %v496 = vmul.f32 %v358, %v358
          %v497 = vmul.f32 %v360, %v360
          %v498 = vmul.f32 %v421, %v421
          %v499 = vmul.f32 %v423, %v423
          %v500 = vmul.f32 %v364, %v364
          %v501 = vmul.f32 %v366, %v366
          %v502 = vmul.f32 %v427, %v427
          %v503 = vmul.f32 %v429, %v429
          %v504 = vmul.f32 %v368, %v368
          %v505 = vmul.f32 %v370, %v370
          %v506 = vmul.f32 %v431, %v431
          %v507 = vmul.f32 %v433, %v433
          %v508 = vmul.f32 %v374, %v374
          %v509 = vmul.f32 %v376, %v376
          %v510 = vmul.f32 %v437, %v437
          %v511 = vmul.f32 %v439, %v439
          %v512 = vmul.f32 %v378, %v378
          %v513 = vmul.f32 %v380, %v380
          %v514 = vmul.f32 %v441, %v441
          %v515 = vmul.f32 %v443, %v443
          %v516 = vadd.f32 %v492, %v496
          %v517 = vadd.f32 %v516, %v500
          %v518 = vadd.f32 %v517, %v504
          %v519 = vadd.f32 %v518, %v508
          %v520 = vadd.f32 %v519, %v512
          %v521 = vrot.slane %v520, 4
          %v522 = vadd.f32 %v520, %v521
          %v523 = vrot.slane %v522, 2
          %v524 = vadd.f32 %v522, %v523
          %v525 = vrot.slane %v524, 1
          %v526 = vadd.f32 %v524, %v525
          %v527 = vadd.f32 %v493, %v497
          %v528 = vadd.f32 %v527, %v501
          %v529 = vadd.f32 %v528, %v505
          %v530 = vadd.f32 %v529, %v509
          %v531 = vadd.f32 %v530, %v513
          %v532 = vrot.slane %v531, 4
          %v533 = vadd.f32 %v531, %v532
          %v534 = vrot.slane %v533, 2
          %v535 = vadd.f32 %v533, %v534
          %v536 = vrot.slane %v535, 1
          %v537 = vadd.f32 %v535, %v536
          %v538 = vadd.f32 %v494, %v498
          %v539 = vadd.f32 %v538, %v502
          %v540 = vadd.f32 %v539, %v506
          %v541 = vadd.f32 %v540, %v510
          %v542 = vadd.f32 %v541, %v514
          %v543 = vrot.slane %v542, 4
          %v544 = vadd.f32 %v542, %v543
          %v545 = vrot.slane %v544, 2
          %v546 = vadd.f32 %v544, %v545
          %v547 = vrot.slane %v546, 1
          %v548 = vadd.f32 %v546, %v547
          %v549 = vadd.f32 %v495, %v499
          %v550 = vadd.f32 %v549, %v503
          %v551 = vadd.f32 %v550, %v507
          %v552 = vadd.f32 %v551, %v511
          %v553 = vadd.f32 %v552, %v515
          %v554 = vrot.slane %v553, 4
          %v555 = vadd.f32 %v553, %v554
          %v556 = vrot.slane %v555, 2
          %v557 = vadd.f32 %v555, %v556
          %v558 = vrot.slane %v557, 1
          %v559 = vadd.f32 %v557, %v558
          %v560 = vmul.f32 %v458, 0.020833334
          %v561 = vmul.f32 %v469, 0.020833334
          %v562 = vmul.f32 %v480, 0.020833334
          %v563 = vmul.f32 %v491, 0.020833334
          %v564 = vmul.f32 %v526, 0.020833334
          %v565 = vmul.f32 %v537, 0.020833334
          %v566 = vmul.f32 %v548, 0.020833334
          %v567 = vmul.f32 %v559, 0.020833334
          %v568 = vmul.f32 %v560, %v560
          %v569 = vmul.f32 %v561, %v561
          %v570 = vmul.f32 %v562, %v562
          %v571 = vmul.f32 %v563, %v563
          %v572 = vsub.f32 %v564, %v568
          %v573 = vsub.f32 %v565, %v569
          %v574 = vsub.f32 %v566, %v570
          %v575 = vsub.f32 %v567, %v571
          %v576 = vmax.f32 %v572, 0.0
          %v577 = vmax.f32 %v573, 0.0
          %v578 = vmax.f32 %v574, 0.0
          %v579 = vmax.f32 %v575, 0.0
          %v580 = vadd.f32 %v576, 1e-05
          %v581 = vadd.f32 %v577, 1e-05
          %v582 = vadd.f32 %v578, 1e-05
          %v583 = vadd.f32 %v579, 1e-05
          %v584 = vrsqrt.pop %v580
          %v585 = vrsqrt.pop %v581
          %v586 = vrsqrt.pop %v582
          %v587 = vrsqrt.pop %v583
          %v592 = vcombine.low %v584, %v585
          %v593 = vcombine.low %v586, %v587
          %v595 = vunpack.c.l.s4 1966171168
          %v596 = vunpack.c.0.s8 %v595
          %v597 = vlaneseq
          %v598 = vshrl.u32 %v597, 7
          %v599 = vsub.s32 %v596, %v598
          %v600 = vrot.slane %v592, %v599
          %v602 = vunpack.c.l.s4 1966171168
          %v603 = vunpack.c.0.s8 %v602
          %v604 = vlaneseq
          %v605 = vshrl.u32 %v604, 7
          %v606 = vsub.s32 %v603, %v605
          %v607 = vrot.slane %v593, %v606
          %v608 = vcombine.low %v600, %v607
          %v610 = vunpack.c.l.s4 1966171168
          %v611 = vunpack.c.0.s8 %v610
          %v612 = vlaneseq
          %v613 = vshrl.u32 %v612, 7
          %v614 = vsub.s32 %v611, %v613
          %v615 = vrot.slane %v608, %v614
          %v617 = vmul.f32 %v445, %v615
          %v619 = vlaneseq
          %v620 = vshrl.u32 %v619, 7
          %v621 = vsub.s32 0, %v620
          %v622 = vrot.slane %v617, %v621
          %v623 = vlaneseq
          %v624 = vshrl.u32 %v623, 7
          %v625 = vsub.s32 1, %v624
          %v626 = vrot.slane %v617, %v625
          %v627 = vlaneseq
          %v628 = vshrl.u32 %v627, 7
          %v629 = vsub.s32 2, %v628
          %v630 = vrot.slane %v617, %v629
          %v631 = vlaneseq
          %v632 = vshrl.u32 %v631, 7
          %v633 = vsub.s32 3, %v632
          %v634 = vrot.slane %v617, %v633
          %v639 = vmul.f32 %v560, %v622
          %v640 = vmul.f32 %v561, %v626
          %v641 = vmul.f32 %v562, %v630
          %v642 = vmul.f32 %v563, %v634
          %v647 = vcombine.low %v639, %v640
          %v648 = vcombine.low %v641, %v642
          %v650 = vunpack.c.l.s4 1966171168
          %v651 = vunpack.c.0.s8 %v650
          %v652 = vlaneseq
          %v653 = vshrl.u32 %v652, 7
          %v654 = vsub.s32 %v651, %v653
          %v655 = vrot.slane %v647, %v654
          %v657 = vunpack.c.l.s4 1966171168
          %v658 = vunpack.c.0.s8 %v657
          %v659 = vlaneseq
          %v660 = vshrl.u32 %v659, 7
          %v661 = vsub.s32 %v658, %v660
          %v662 = vrot.slane %v648, %v661
          %v663 = vcombine.low %v655, %v662
          %v665 = vunpack.c.l.s4 1966171168
          %v666 = vunpack.c.0.s8 %v665
          %v667 = vlaneseq
          %v668 = vshrl.u32 %v667, 7
          %v669 = vsub.s32 %v666, %v668
          %v670 = vrot.slane %v663, %v669
          %v672 = vsub.f32 %v447, %v670
          %v673 = vmul.f32 %v354, %v622
          %v674 = vmul.f32 %v356, %v626
          %v675 = vmul.f32 %v417, %v630
          %v676 = vmul.f32 %v419, %v634
          %v677 = vmul.f32 %v358, %v622
          %v678 = vmul.f32 %v360, %v626
          %v679 = vmul.f32 %v421, %v630
          %v680 = vmul.f32 %v423, %v634
          %v681 = vmul.f32 %v364, %v622
          %v682 = vmul.f32 %v366, %v626
          %v683 = vmul.f32 %v427, %v630
          %v684 = vmul.f32 %v429, %v634
          %v685 = vmul.f32 %v368, %v622
          %v686 = vmul.f32 %v370, %v626
          %v687 = vmul.f32 %v431, %v630
          %v688 = vmul.f32 %v433, %v634
          %v689 = vmul.f32 %v374, %v622
          %v690 = vmul.f32 %v376, %v626
          %v691 = vmul.f32 %v437, %v630
          %v692 = vmul.f32 %v439, %v634
          %v693 = vmul.f32 %v378, %v622
          %v694 = vmul.f32 %v380, %v626
          %v695 = vmul.f32 %v441, %v630
          %v696 = vmul.f32 %v443, %v634
          %v698 = vlaneseq
          %v699 = vshrl.u32 %v698, 7
          %v700 = vsub.s32 0, %v699
          %v701 = vrot.slane %v672, %v700
          %v702 = vlaneseq
          %v703 = vshrl.u32 %v702, 7
          %v704 = vsub.s32 1, %v703
          %v705 = vrot.slane %v672, %v704
          %v706 = vlaneseq
          %v707 = vshrl.u32 %v706, 7
          %v708 = vsub.s32 2, %v707
          %v709 = vrot.slane %v672, %v708
          %v710 = vlaneseq
          %v711 = vshrl.u32 %v710, 7
          %v712 = vsub.s32 3, %v711
          %v713 = vrot.slane %v672, %v712
          %v718 = vadd.f32 %v673, %v701
          %v719 = vadd.f32 %v674, %v705
          %v720 = vadd.f32 %v675, %v709
          %v721 = vadd.f32 %v676, %v713
          %v722 = vadd.f32 %v677, %v701
          %v723 = vadd.f32 %v678, %v705
          %v724 = vadd.f32 %v679, %v709
          %v725 = vadd.f32 %v680, %v713
          %v726 = vadd.f32 %v681, %v701
          %v727 = vadd.f32 %v682, %v705
          %v728 = vadd.f32 %v683, %v709
          %v729 = vadd.f32 %v684, %v713
          %v730 = vadd.f32 %v685, %v701
          %v731 = vadd.f32 %v686, %v705
          %v732 = vadd.f32 %v687, %v709
          %v733 = vadd.f32 %v688, %v713
          %v734 = vadd.f32 %v689, %v701
          %v735 = vadd.f32 %v690, %v705
          %v736 = vadd.f32 %v691, %v709
          %v737 = vadd.f32 %v692, %v713
          %v738 = vadd.f32 %v693, %v701
          %v739 = vadd.f32 %v694, %v705
          %v740 = vadd.f32 %v695, %v709
          %v741 = vadd.f32 %v696, %v713
          %v742 = vmax.f32 %v718, 0.0
          %v743 = vmax.f32 %v719, 0.0
          %v744 = vmax.f32 %v720, 0.0
          %v745 = vmax.f32 %v721, 0.0
          %v746 = vmax.f32 %v722, 0.0
          %v747 = vmax.f32 %v723, 0.0
          %v748 = vmax.f32 %v724, 0.0
          %v749 = vmax.f32 %v725, 0.0
          %v750 = vmax.f32 %v726, 0.0
          %v751 = vmax.f32 %v727, 0.0
          %v752 = vmax.f32 %v728, 0.0
          %v753 = vmax.f32 %v729, 0.0
          %v754 = vmax.f32 %v730, 0.0
          %v755 = vmax.f32 %v731, 0.0
          %v756 = vmax.f32 %v732, 0.0
          %v757 = vmax.f32 %v733, 0.0
          %v758 = vmax.f32 %v734, 0.0
          %v759 = vmax.f32 %v735, 0.0
          %v760 = vmax.f32 %v736, 0.0
          %v761 = vmax.f32 %v737, 0.0
          %v762 = vmax.f32 %v738, 0.0
          %v763 = vmax.f32 %v739, 0.0
          %v764 = vmax.f32 %v740, 0.0
          %v765 = vmax.f32 %v741, 0.0
          %766 = vst [vmem:[#allocation2] sm:$0xff] %v742
          %767 = vst [vmem:[#allocation2 + $0x8] sm:$0xff] %v743
          %768 = vst [vmem:[#allocation2 + $0x10] sm:$0xff] %v744
          %769 = vst [vmem:[#allocation2 + $0x18] sm:$0xff] %v745
          %770 = vst [vmem:[#allocation2 + $0x20] sm:$0xff] %v746
          %771 = vst [vmem:[#allocation2 + $0x28] sm:$0xff] %v747
          %772 = vst [vmem:[#allocation2 + $0x30] sm:$0xff] %v748
          %773 = vst [vmem:[#allocation2 + $0x38] sm:$0xff] %v749
          %774 = vst [vmem:[#allocation2 + $0x40] sm:$0xff] %v750
          %775 = vst [vmem:[#allocation2 + $0x48] sm:$0xff] %v751
          %776 = vst [vmem:[#allocation2 + $0x50] sm:$0xff] %v752
          %777 = vst [vmem:[#allocation2 + $0x58] sm:$0xff] %v753
          %778 = vst [vmem:[#allocation2 + $0x60] sm:$0xff] %v754
          %779 = vst [vmem:[#allocation2 + $0x68] sm:$0xff] %v755
          %780 = vst [vmem:[#allocation2 + $0x70] sm:$0xff] %v756
          %781 = vst [vmem:[#allocation2 + $0x78] sm:$0xff] %v757
          %782 = vst [vmem:[#allocation2 + $0x80] sm:$0xff] %v758
          %783 = vst [vmem:[#allocation2 + $0x88] sm:$0xff] %v759
          %784 = vst [vmem:[#allocation2 + $0x90] sm:$0xff] %v760
          %785 = vst [vmem:[#allocation2 + $0x98] sm:$0xff] %v761
          %786 = vst [vmem:[#allocation2 + $0xa0] sm:$0xff] %v762
          %787 = vst [vmem:[#allocation2 + $0xa8] sm:$0xff] %v763
          %788 = vst [vmem:[#allocation2 + $0xb0] sm:$0xff] %v764
          %789 = vst [vmem:[#allocation2 + $0xb8] sm:$0xff] %v765
        $region56: #{tpu_custom_call.1} parent=39 // pred_fallthru
          _
        %p790 = scmp.gt.s32.totalorder %s21, 0
        // Predicated region
        $region57: #{tpu_custom_call.1} parent=39 // pred_check
          %p791 = pneg %p790
        $region58: #{tpu_custom_call.1} parent=39 // pred_check_branch
          %793 = sbr.rel (%p791) target = $region60
        $region59: #{tpu_custom_call.1} parent=39 // pred_region
          %v794 = vld [vmem:[#allocation2] sm:$0xff]
          %v795 = vld [vmem:[#allocation2 + $0x8] sm:$0xff]
          %v796 = vld [vmem:[#allocation2 + $0x10] sm:$0xff]
          %v797 = vld [vmem:[#allocation2 + $0x18] sm:$0xff]
          %v798 = vld [vmem:[#allocation2 + $0x20] sm:$0xff]
          %v799 = vld [vmem:[#allocation2 + $0x28] sm:$0xff]
          %v800 = vld [vmem:[#allocation2 + $0x30] sm:$0xff]
          %v801 = vld [vmem:[#allocation2 + $0x38] sm:$0xff]
          %v802 = vld [vmem:[#allocation2 + $0x40] sm:$0xff]
          %v803 = vld [vmem:[#allocation2 + $0x48] sm:$0xff]
          %v804 = vld [vmem:[#allocation2 + $0x50] sm:$0xff]
          %v805 = vld [vmem:[#allocation2 + $0x58] sm:$0xff]
          %v806 = vld [vmem:[#allocation2 + $0x60] sm:$0xff]
          %v807 = vld [vmem:[#allocation2 + $0x68] sm:$0xff]
          %v808 = vld [vmem:[#allocation2 + $0x70] sm:$0xff]
          %v809 = vld [vmem:[#allocation2 + $0x78] sm:$0xff]
          %v810 = vld [vmem:[#allocation2 + $0x80] sm:$0xff]
          %v811 = vld [vmem:[#allocation2 + $0x88] sm:$0xff]
          %v812 = vld [vmem:[#allocation2 + $0x90] sm:$0xff]
          %v813 = vld [vmem:[#allocation2 + $0x98] sm:$0xff]
          %v814 = vld [vmem:[#allocation2 + $0xa0] sm:$0xff]
          %v815 = vld [vmem:[#allocation2 + $0xa8] sm:$0xff]
          %v816 = vld [vmem:[#allocation2 + $0xb0] sm:$0xff]
          %v817 = vld [vmem:[#allocation2 + $0xb8] sm:$0xff]
          %v818 = vpack.c.bf16 %v798, %v794
          %v819 = vpack.c.bf16 %v799, %v795
          %v820 = vpack.c.bf16 %v800, %v796
          %v821 = vpack.c.bf16 %v801, %v797
          %v822 = vpack.c.bf16 %v806, %v802
          %v823 = vpack.c.bf16 %v807, %v803
          %v824 = vpack.c.bf16 %v808, %v804
          %v825 = vpack.c.bf16 %v809, %v805
          %v826 = vpack.c.bf16 %v814, %v810
          %v827 = vpack.c.bf16 %v815, %v811
          %v828 = vpack.c.bf16 %v816, %v812
          %v829 = vpack.c.bf16 %v817, %v813
          %v830 = vld [vmem:[%s241] sm:$0xff]
          %v831 = vld [vmem:[%s241 + $0x8] sm:$0xff]
          %v832 = vld [vmem:[%s241 + $0x10] sm:$0xff]
          %v833 = vld [vmem:[%s241 + $0x18] sm:$0xff]
          %v834 = vld [vmem:[%s241 + $0x20] sm:$0xff]
          %v835 = vld [vmem:[%s241 + $0x28] sm:$0xff]
          %v836 = vld [vmem:[%s241 + $0x30] sm:$0xff]
          %v837 = vld [vmem:[%s241 + $0x38] sm:$0xff]
          %v838 = vld [vmem:[%s241 + $0x40] sm:$0xff]
          %v839 = vld [vmem:[%s241 + $0x48] sm:$0xff]
          %v840 = vld [vmem:[%s241 + $0x50] sm:$0xff]
          %v841 = vld [vmem:[%s241 + $0x58] sm:$0xff]
          %v842 = vld [vmem:[%s241 + $0x60] sm:$0xff]
          %v843 = vld [vmem:[%s241 + $0x68] sm:$0xff]
          %v844 = vld [vmem:[%s241 + $0x70] sm:$0xff]
          %v845 = vld [vmem:[%s241 + $0x78] sm:$0xff]
          %v846 = vld [vmem:[%s241 + $0x80] sm:$0xff]
          %v847 = vld [vmem:[%s241 + $0x88] sm:$0xff]
          %v848 = vld [vmem:[%s241 + $0x90] sm:$0xff]
          %v849 = vld [vmem:[%s241 + $0x98] sm:$0xff]
          %v850 = vld [vmem:[%s241 + $0xa0] sm:$0xff]
          %v851 = vld [vmem:[%s241 + $0xa8] sm:$0xff]
          %v852 = vld [vmem:[%s241 + $0xb0] sm:$0xff]
          %v853 = vld [vmem:[%s241 + $0xb8] sm:$0xff]
          %v854 = vld [vmem:[%s241 + $0xc0] sm:$0xff]
          %v855 = vld [vmem:[%s241 + $0xc8] sm:$0xff]
          %v856 = vld [vmem:[%s241 + $0xd0] sm:$0xff]
          %v857 = vld [vmem:[%s241 + $0xd8] sm:$0xff]
          %v858 = vld [vmem:[%s241 + $0xe0] sm:$0xff]
          %v859 = vld [vmem:[%s241 + $0xe8] sm:$0xff]
          %v860 = vld [vmem:[%s241 + $0xf0] sm:$0xff]
          %v861 = vld [vmem:[%s241 + $0xf8] sm:$0xff]
          %v862 = vld [vmem:[%s241 + $0x100] sm:$0xff]
          %v863 = vld [vmem:[%s241 + $0x108] sm:$0xff]
          %v864 = vld [vmem:[%s241 + $0x110] sm:$0xff]
          %v865 = vld [vmem:[%s241 + $0x118] sm:$0xff]
          %v866 = vld [vmem:[%s241 + $0x120] sm:$0xff]
          %v867 = vld [vmem:[%s241 + $0x128] sm:$0xff]
          %v868 = vld [vmem:[%s241 + $0x130] sm:$0xff]
          %v869 = vld [vmem:[%s241 + $0x138] sm:$0xff]
          %v870 = vld [vmem:[%s241 + $0x140] sm:$0xff]
          %v871 = vld [vmem:[%s241 + $0x148] sm:$0xff]
          %v872 = vld [vmem:[%s241 + $0x150] sm:$0xff]
          %v873 = vld [vmem:[%s241 + $0x158] sm:$0xff]
          %v874 = vld [vmem:[%s241 + $0x160] sm:$0xff]
          %v875 = vld [vmem:[%s241 + $0x168] sm:$0xff]
          %v876 = vld [vmem:[%s241 + $0x170] sm:$0xff]
          %v877 = vld [vmem:[%s241 + $0x178] sm:$0xff]
          %v878 = vld [vmem:[%s241 + $0x180] sm:$0xff]
          %v879 = vld [vmem:[%s241 + $0x188] sm:$0xff]
          %v880 = vld [vmem:[%s241 + $0x190] sm:$0xff]
          %v881 = vld [vmem:[%s241 + $0x198] sm:$0xff]
          %v882 = vld [vmem:[%s241 + $0x1a0] sm:$0xff]
          %v883 = vld [vmem:[%s241 + $0x1a8] sm:$0xff]
          %v884 = vld [vmem:[%s241 + $0x1b0] sm:$0xff]
          %v885 = vld [vmem:[%s241 + $0x1b8] sm:$0xff]
          %v886 = vld [vmem:[%s241 + $0x1c0] sm:$0xff]
          %v887 = vld [vmem:[%s241 + $0x1c8] sm:$0xff]
          %v888 = vld [vmem:[%s241 + $0x1d0] sm:$0xff]
          %v889 = vld [vmem:[%s241 + $0x1d8] sm:$0xff]
          %v890 = vld [vmem:[%s241 + $0x1e0] sm:$0xff]
          %v891 = vld [vmem:[%s241 + $0x1e8] sm:$0xff]
          %v892 = vld [vmem:[%s241 + $0x1f0] sm:$0xff]
          %v893 = vld [vmem:[%s241 + $0x1f8] sm:$0xff]
          %v894 = vld [vmem:[%s241 + $0x200] sm:$0xff]
          %v895 = vld [vmem:[%s241 + $0x208] sm:$0xff]
          %v896 = vld [vmem:[%s241 + $0x210] sm:$0xff]
          %v897 = vld [vmem:[%s241 + $0x218] sm:$0xff]
          %v898 = vld [vmem:[%s241 + $0x220] sm:$0xff]
          %v899 = vld [vmem:[%s241 + $0x228] sm:$0xff]
          %v900 = vld [vmem:[%s241 + $0x230] sm:$0xff]
          %v901 = vld [vmem:[%s241 + $0x238] sm:$0xff]
          %v902 = vld [vmem:[%s241 + $0x240] sm:$0xff]
          %v903 = vld [vmem:[%s241 + $0x248] sm:$0xff]
          %v904 = vld [vmem:[%s241 + $0x250] sm:$0xff]
          %v905 = vld [vmem:[%s241 + $0x258] sm:$0xff]
          %v906 = vld [vmem:[%s241 + $0x260] sm:$0xff]
          %v907 = vld [vmem:[%s241 + $0x268] sm:$0xff]
          %v908 = vld [vmem:[%s241 + $0x270] sm:$0xff]
          %v909 = vld [vmem:[%s241 + $0x278] sm:$0xff]
          %v910 = vld [vmem:[%s241 + $0x280] sm:$0xff]
          %v911 = vld [vmem:[%s241 + $0x288] sm:$0xff]
          %v912 = vld [vmem:[%s241 + $0x290] sm:$0xff]
          %v913 = vld [vmem:[%s241 + $0x298] sm:$0xff]
          %v914 = vld [vmem:[%s241 + $0x2a0] sm:$0xff]
          %v915 = vld [vmem:[%s241 + $0x2a8] sm:$0xff]
          %v916 = vld [vmem:[%s241 + $0x2b0] sm:$0xff]
          %v917 = vld [vmem:[%s241 + $0x2b8] sm:$0xff]
          %v918 = vld [vmem:[%s241 + $0x2c0] sm:$0xff]
          %v919 = vld [vmem:[%s241 + $0x2c8] sm:$0xff]
          %v920 = vld [vmem:[%s241 + $0x2d0] sm:$0xff]
          %v921 = vld [vmem:[%s241 + $0x2d8] sm:$0xff]
          %v922 = vld [vmem:[%s241 + $0x2e0] sm:$0xff]
          %v923 = vld [vmem:[%s241 + $0x2e8] sm:$0xff]
          %v924 = vld [vmem:[%s241 + $0x2f0] sm:$0xff]
          %v925 = vld [vmem:[%s241 + $0x2f8] sm:$0xff]
          %v926 = vld [vmem:[%s241 + $0x300] sm:$0xff]
          %v927 = vld [vmem:[%s241 + $0x308] sm:$0xff]
          %v928 = vld [vmem:[%s241 + $0x310] sm:$0xff]
          %v929 = vld [vmem:[%s241 + $0x318] sm:$0xff]
          %v930 = vld [vmem:[%s241 + $0x320] sm:$0xff]
          %v931 = vld [vmem:[%s241 + $0x328] sm:$0xff]
          %v932 = vld [vmem:[%s241 + $0x330] sm:$0xff]
          %v933 = vld [vmem:[%s241 + $0x338] sm:$0xff]
          %v934 = vld [vmem:[%s241 + $0x340] sm:$0xff]
          %v935 = vld [vmem:[%s241 + $0x348] sm:$0xff]
          %v936 = vld [vmem:[%s241 + $0x350] sm:$0xff]
          %v937 = vld [vmem:[%s241 + $0x358] sm:$0xff]
          %v938 = vld [vmem:[%s241 + $0x360] sm:$0xff]
          %v939 = vld [vmem:[%s241 + $0x368] sm:$0xff]
          %v940 = vld [vmem:[%s241 + $0x370] sm:$0xff]
          %v941 = vld [vmem:[%s241 + $0x378] sm:$0xff]
          %v942 = vld [vmem:[%s241 + $0x380] sm:$0xff]
          %v943 = vld [vmem:[%s241 + $0x388] sm:$0xff]
          %v944 = vld [vmem:[%s241 + $0x390] sm:$0xff]
          %v945 = vld [vmem:[%s241 + $0x398] sm:$0xff]
          %v946 = vld [vmem:[%s241 + $0x3a0] sm:$0xff]
          %v947 = vld [vmem:[%s241 + $0x3a8] sm:$0xff]
          %v948 = vld [vmem:[%s241 + $0x3b0] sm:$0xff]
          %v949 = vld [vmem:[%s241 + $0x3b8] sm:$0xff]
          %v950 = vld [vmem:[%s241 + $0x3c0] sm:$0xff]
          %v951 = vld [vmem:[%s241 + $0x3c8] sm:$0xff]
          %v952 = vld [vmem:[%s241 + $0x3d0] sm:$0xff]
          %v953 = vld [vmem:[%s241 + $0x3d8] sm:$0xff]
          %v954 = vld [vmem:[%s241 + $0x3e0] sm:$0xff]
          %v955 = vld [vmem:[%s241 + $0x3e8] sm:$0xff]
          %v956 = vld [vmem:[%s241 + $0x3f0] sm:$0xff]
          %v957 = vld [vmem:[%s241 + $0x3f8] sm:$0xff]
          %v1086 = vunpack.c.l.b16 %v830
          %v1087 = vunpack.c.h.b16 %v830
          %v1088 = vunpack.c.l.b16 %v831
          %v1089 = vunpack.c.h.b16 %v831
          %v1090 = vunpack.c.l.b16 %v832
          %v1091 = vunpack.c.h.b16 %v832
          %v1092 = vunpack.c.l.b16 %v833
          %v1093 = vunpack.c.h.b16 %v833
          %v1094 = vunpack.c.l.b16 %v834
          %v1095 = vunpack.c.h.b16 %v834
          %v1096 = vunpack.c.l.b16 %v835
          %v1097 = vunpack.c.h.b16 %v835
          %v1098 = vunpack.c.l.b16 %v836
          %v1099 = vunpack.c.h.b16 %v836
          %v1100 = vunpack.c.l.b16 %v837
          %v1101 = vunpack.c.h.b16 %v837
          %v1102 = vunpack.c.l.b16 %v838
          %v1103 = vunpack.c.h.b16 %v838
          %v1104 = vunpack.c.l.b16 %v839
          %v1105 = vunpack.c.h.b16 %v839
          %v1106 = vunpack.c.l.b16 %v840
          %v1107 = vunpack.c.h.b16 %v840
          %v1108 = vunpack.c.l.b16 %v841
          %v1109 = vunpack.c.h.b16 %v841
          %v1110 = vunpack.c.l.b16 %v842
          %v1111 = vunpack.c.h.b16 %v842
          %v1112 = vunpack.c.l.b16 %v843
          %v1113 = vunpack.c.h.b16 %v843
          %v1114 = vunpack.c.l.b16 %v844
          %v1115 = vunpack.c.h.b16 %v844
          %v1116 = vunpack.c.l.b16 %v845
          %v1117 = vunpack.c.h.b16 %v845
          %v1118 = vunpack.c.l.b16 %v846
          %v1119 = vunpack.c.h.b16 %v846
          %v1120 = vunpack.c.l.b16 %v847
          %v1121 = vunpack.c.h.b16 %v847
          %v1122 = vunpack.c.l.b16 %v848
          %v1123 = vunpack.c.h.b16 %v848
          %v1124 = vunpack.c.l.b16 %v849
          %v1125 = vunpack.c.h.b16 %v849
          %v1126 = vunpack.c.l.b16 %v850
          %v1127 = vunpack.c.h.b16 %v850
          %v1128 = vunpack.c.l.b16 %v851
          %v1129 = vunpack.c.h.b16 %v851
          %v1130 = vunpack.c.l.b16 %v852
          %v1131 = vunpack.c.h.b16 %v852
          %v1132 = vunpack.c.l.b16 %v853
          %v1133 = vunpack.c.h.b16 %v853
          %v1134 = vunpack.c.l.b16 %v854
          %v1135 = vunpack.c.h.b16 %v854
          %v1136 = vunpack.c.l.b16 %v855
          %v1137 = vunpack.c.h.b16 %v855
          %v1138 = vunpack.c.l.b16 %v856
          %v1139 = vunpack.c.h.b16 %v856
          %v1140 = vunpack.c.l.b16 %v857
          %v1141 = vunpack.c.h.b16 %v857
          %v1142 = vunpack.c.l.b16 %v858
          %v1143 = vunpack.c.h.b16 %v858
          %v1144 = vunpack.c.l.b16 %v859
          %v1145 = vunpack.c.h.b16 %v859
          %v1146 = vunpack.c.l.b16 %v860
          %v1147 = vunpack.c.h.b16 %v860
          %v1148 = vunpack.c.l.b16 %v861
          %v1149 = vunpack.c.h.b16 %v861
          %v1150 = vunpack.c.l.b16 %v862
          %v1151 = vunpack.c.h.b16 %v862
          %v1152 = vunpack.c.l.b16 %v863
          %v1153 = vunpack.c.h.b16 %v863
          %v1154 = vunpack.c.l.b16 %v864
          %v1155 = vunpack.c.h.b16 %v864
          %v1156 = vunpack.c.l.b16 %v865
          %v1157 = vunpack.c.h.b16 %v865
          %v1158 = vunpack.c.l.b16 %v866
          %v1159 = vunpack.c.h.b16 %v866
          %v1160 = vunpack.c.l.b16 %v867
          %v1161 = vunpack.c.h.b16 %v867
          %v1162 = vunpack.c.l.b16 %v868
          %v1163 = vunpack.c.h.b16 %v868
          %v1164 = vunpack.c.l.b16 %v869
          %v1165 = vunpack.c.h.b16 %v869
          %v1166 = vunpack.c.l.b16 %v870
          %v1167 = vunpack.c.h.b16 %v870
          %v1168 = vunpack.c.l.b16 %v871
          %v1169 = vunpack.c.h.b16 %v871
          %v1170 = vunpack.c.l.b16 %v872
          %v1171 = vunpack.c.h.b16 %v872
          %v1172 = vunpack.c.l.b16 %v873
          %v1173 = vunpack.c.h.b16 %v873
          %v1174 = vunpack.c.l.b16 %v874
          %v1175 = vunpack.c.h.b16 %v874
          %v1176 = vunpack.c.l.b16 %v875
          %v1177 = vunpack.c.h.b16 %v875
          %v1178 = vunpack.c.l.b16 %v876
          %v1179 = vunpack.c.h.b16 %v876
          %v1180 = vunpack.c.l.b16 %v877
          %v1181 = vunpack.c.h.b16 %v877
          %v1182 = vunpack.c.l.b16 %v878
          %v1183 = vunpack.c.h.b16 %v878
          %v1184 = vunpack.c.l.b16 %v879
          %v1185 = vunpack.c.h.b16 %v879
          %v1186 = vunpack.c.l.b16 %v880
          %v1187 = vunpack.c.h.b16 %v880
          %v1188 = vunpack.c.l.b16 %v881
          %v1189 = vunpack.c.h.b16 %v881
          %v1190 = vunpack.c.l.b16 %v882
          %v1191 = vunpack.c.h.b16 %v882
          %v1192 = vunpack.c.l.b16 %v883
          %v1193 = vunpack.c.h.b16 %v883
          %v1194 = vunpack.c.l.b16 %v884
          %v1195 = vunpack.c.h.b16 %v884
          %v1196 = vunpack.c.l.b16 %v885
          %v1197 = vunpack.c.h.b16 %v885
          %v1198 = vunpack.c.l.b16 %v886
          %v1199 = vunpack.c.h.b16 %v886
          %v1200 = vunpack.c.l.b16 %v887
          %v1201 = vunpack.c.h.b16 %v887
          %v1202 = vunpack.c.l.b16 %v888
          %v1203 = vunpack.c.h.b16 %v888
          %v1204 = vunpack.c.l.b16 %v889
          %v1205 = vunpack.c.h.b16 %v889
          %v1206 = vunpack.c.l.b16 %v890
          %v1207 = vunpack.c.h.b16 %v890
          %v1208 = vunpack.c.l.b16 %v891
          %v1209 = vunpack.c.h.b16 %v891
          %v1210 = vunpack.c.l.b16 %v892
          %v1211 = vunpack.c.h.b16 %v892
          %v1212 = vunpack.c.l.b16 %v893
          %v1213 = vunpack.c.h.b16 %v893
          %v1214 = vunpack.c.l.b16 %v894
          %v1215 = vunpack.c.h.b16 %v894
          %v1216 = vunpack.c.l.b16 %v895
          %v1217 = vunpack.c.h.b16 %v895
          %v1218 = vunpack.c.l.b16 %v896
          %v1219 = vunpack.c.h.b16 %v896
          %v1220 = vunpack.c.l.b16 %v897
          %v1221 = vunpack.c.h.b16 %v897
          %v1222 = vunpack.c.l.b16 %v898
          %v1223 = vunpack.c.h.b16 %v898
          %v1224 = vunpack.c.l.b16 %v899
          %v1225 = vunpack.c.h.b16 %v899
          %v1226 = vunpack.c.l.b16 %v900
          %v1227 = vunpack.c.h.b16 %v900
          %v1228 = vunpack.c.l.b16 %v901
          %v1229 = vunpack.c.h.b16 %v901
          %v1230 = vunpack.c.l.b16 %v902
          %v1231 = vunpack.c.h.b16 %v902
          %v1232 = vunpack.c.l.b16 %v903
          %v1233 = vunpack.c.h.b16 %v903
          %v1234 = vunpack.c.l.b16 %v904
          %v1235 = vunpack.c.h.b16 %v904
          %v1236 = vunpack.c.l.b16 %v905
          %v1237 = vunpack.c.h.b16 %v905
          %v1238 = vunpack.c.l.b16 %v906
          %v1239 = vunpack.c.h.b16 %v906
          %v1240 = vunpack.c.l.b16 %v907
          %v1241 = vunpack.c.h.b16 %v907
          %v1242 = vunpack.c.l.b16 %v908
          %v1243 = vunpack.c.h.b16 %v908
          %v1244 = vunpack.c.l.b16 %v909
          %v1245 = vunpack.c.h.b16 %v909
          %v1246 = vunpack.c.l.b16 %v910
          %v1247 = vunpack.c.h.b16 %v910
          %v1248 = vunpack.c.l.b16 %v911
          %v1249 = vunpack.c.h.b16 %v911
          %v1250 = vunpack.c.l.b16 %v912
          %v1251 = vunpack.c.h.b16 %v912
          %v1252 = vunpack.c.l.b16 %v913
          %v1253 = vunpack.c.h.b16 %v913
          %v1254 = vunpack.c.l.b16 %v914
          %v1255 = vunpack.c.h.b16 %v914
          %v1256 = vunpack.c.l.b16 %v915
          %v1257 = vunpack.c.h.b16 %v915
          %v1258 = vunpack.c.l.b16 %v916
          %v1259 = vunpack.c.h.b16 %v916
          %v1260 = vunpack.c.l.b16 %v917
          %v1261 = vunpack.c.h.b16 %v917
          %v1262 = vunpack.c.l.b16 %v918
          %v1263 = vunpack.c.h.b16 %v918
          %v1264 = vunpack.c.l.b16 %v919
          %v1265 = vunpack.c.h.b16 %v919
          %v1266 = vunpack.c.l.b16 %v920
          %v1267 = vunpack.c.h.b16 %v920
          %v1268 = vunpack.c.l.b16 %v921
          %v1269 = vunpack.c.h.b16 %v921
          %v1270 = vunpack.c.l.b16 %v922
          %v1271 = vunpack.c.h.b16 %v922
          %v1272 = vunpack.c.l.b16 %v923
          %v1273 = vunpack.c.h.b16 %v923
          %v1274 = vunpack.c.l.b16 %v924
          %v1275 = vunpack.c.h.b16 %v924
          %v1276 = vunpack.c.l.b16 %v925
          %v1277 = vunpack.c.h.b16 %v925
          %v1278 = vunpack.c.l.b16 %v926
          %v1279 = vunpack.c.h.b16 %v926
          %v1280 = vunpack.c.l.b16 %v927
          %v1281 = vunpack.c.h.b16 %v927
          %v1282 = vunpack.c.l.b16 %v928
          %v1283 = vunpack.c.h.b16 %v928
          %v1284 = vunpack.c.l.b16 %v929
          %v1285 = vunpack.c.h.b16 %v929
          %v1286 = vunpack.c.l.b16 %v930
          %v1287 = vunpack.c.h.b16 %v930
          %v1288 = vunpack.c.l.b16 %v931
          %v1289 = vunpack.c.h.b16 %v931
          %v1290 = vunpack.c.l.b16 %v932
          %v1291 = vunpack.c.h.b16 %v932
          %v1292 = vunpack.c.l.b16 %v933
          %v1293 = vunpack.c.h.b16 %v933
          %v1294 = vunpack.c.l.b16 %v934
          %v1295 = vunpack.c.h.b16 %v934
          %v1296 = vunpack.c.l.b16 %v935
          %v1297 = vunpack.c.h.b16 %v935
          %v1298 = vunpack.c.l.b16 %v936
          %v1299 = vunpack.c.h.b16 %v936
          %v1300 = vunpack.c.l.b16 %v937
          %v1301 = vunpack.c.h.b16 %v937
          %v1302 = vunpack.c.l.b16 %v938
          %v1303 = vunpack.c.h.b16 %v938
          %v1304 = vunpack.c.l.b16 %v939
          %v1305 = vunpack.c.h.b16 %v939
          %v1306 = vunpack.c.l.b16 %v940
          %v1307 = vunpack.c.h.b16 %v940
          %v1308 = vunpack.c.l.b16 %v941
          %v1309 = vunpack.c.h.b16 %v941
          %v1310 = vunpack.c.l.b16 %v942
          %v1311 = vunpack.c.h.b16 %v942
          %v1312 = vunpack.c.l.b16 %v943
          %v1313 = vunpack.c.h.b16 %v943
          %v1314 = vunpack.c.l.b16 %v944
          %v1315 = vunpack.c.h.b16 %v944
          %v1316 = vunpack.c.l.b16 %v945
          %v1317 = vunpack.c.h.b16 %v945
          %v1318 = vunpack.c.l.b16 %v946
          %v1319 = vunpack.c.h.b16 %v946
          %v1320 = vunpack.c.l.b16 %v947
          %v1321 = vunpack.c.h.b16 %v947
          %v1322 = vunpack.c.l.b16 %v948
          %v1323 = vunpack.c.h.b16 %v948
          %v1324 = vunpack.c.l.b16 %v949
          %v1325 = vunpack.c.h.b16 %v949
          %v1326 = vunpack.c.l.b16 %v950
          %v1327 = vunpack.c.h.b16 %v950
          %v1328 = vunpack.c.l.b16 %v951
          %v1329 = vunpack.c.h.b16 %v951
          %v1330 = vunpack.c.l.b16 %v952
          %v1331 = vunpack.c.h.b16 %v952
          %v1332 = vunpack.c.l.b16 %v953
          %v1333 = vunpack.c.h.b16 %v953
          %v1334 = vunpack.c.l.b16 %v954
          %v1335 = vunpack.c.h.b16 %v954
          %v1336 = vunpack.c.l.b16 %v955
          %v1337 = vunpack.c.h.b16 %v955
          %v1338 = vunpack.c.l.b16 %v956
          %v1339 = vunpack.c.h.b16 %v956
          %v1340 = vunpack.c.l.b16 %v957
          %v1341 = vunpack.c.h.b16 %v957
          %v1342 = vpack.c.b16 %v1090, %v1086
          %v1343 = vpack.c.b16 %v1091, %v1087
          %v1344 = vpack.c.b16 %v1092, %v1088
          %v1345 = vpack.c.b16 %v1093, %v1089
          %v1346 = vpack.c.b16 %v1098, %v1094
          %v1347 = vpack.c.b16 %v1099, %v1095
          %v1348 = vpack.c.b16 %v1100, %v1096
          %v1349 = vpack.c.b16 %v1101, %v1097
          %v1350 = vpack.c.b16 %v1106, %v1102
          %v1351 = vpack.c.b16 %v1107, %v1103
          %v1352 = vpack.c.b16 %v1108, %v1104
          %v1353 = vpack.c.b16 %v1109, %v1105
          %v1354 = vpack.c.b16 %v1114, %v1110
          %v1355 = vpack.c.b16 %v1115, %v1111
          %v1356 = vpack.c.b16 %v1116, %v1112
          %v1357 = vpack.c.b16 %v1117, %v1113
          %v1358 = vpack.c.b16 %v1122, %v1118
          %v1359 = vpack.c.b16 %v1123, %v1119
          %v1360 = vpack.c.b16 %v1124, %v1120
          %v1361 = vpack.c.b16 %v1125, %v1121
          %v1362 = vpack.c.b16 %v1130, %v1126
          %v1363 = vpack.c.b16 %v1131, %v1127
          %v1364 = vpack.c.b16 %v1132, %v1128
          %v1365 = vpack.c.b16 %v1133, %v1129
          %v1366 = vpack.c.b16 %v1138, %v1134
          %v1367 = vpack.c.b16 %v1139, %v1135
          %v1368 = vpack.c.b16 %v1140, %v1136
          %v1369 = vpack.c.b16 %v1141, %v1137
          %v1370 = vpack.c.b16 %v1146, %v1142
          %v1371 = vpack.c.b16 %v1147, %v1143
          %v1372 = vpack.c.b16 %v1148, %v1144
          %v1373 = vpack.c.b16 %v1149, %v1145
          %v1374 = vpack.c.b16 %v1154, %v1150
          %v1375 = vpack.c.b16 %v1155, %v1151
          %v1376 = vpack.c.b16 %v1156, %v1152
          %v1377 = vpack.c.b16 %v1157, %v1153
          %v1378 = vpack.c.b16 %v1162, %v1158
          %v1379 = vpack.c.b16 %v1163, %v1159
          %v1380 = vpack.c.b16 %v1164, %v1160
          %v1381 = vpack.c.b16 %v1165, %v1161
          %v1382 = vpack.c.b16 %v1170, %v1166
          %v1383 = vpack.c.b16 %v1171, %v1167
          %v1384 = vpack.c.b16 %v1172, %v1168
          %v1385 = vpack.c.b16 %v1173, %v1169
          %v1386 = vpack.c.b16 %v1178, %v1174
          %v1387 = vpack.c.b16 %v1179, %v1175
          %v1388 = vpack.c.b16 %v1180, %v1176
          %v1389 = vpack.c.b16 %v1181, %v1177
          %v1390 = vpack.c.b16 %v1186, %v1182
          %v1391 = vpack.c.b16 %v1187, %v1183
          %v1392 = vpack.c.b16 %v1188, %v1184
          %v1393 = vpack.c.b16 %v1189, %v1185
          %v1394 = vpack.c.b16 %v1194, %v1190
          %v1395 = vpack.c.b16 %v1195, %v1191
          %v1396 = vpack.c.b16 %v1196, %v1192
          %v1397 = vpack.c.b16 %v1197, %v1193
          %v1398 = vpack.c.b16 %v1202, %v1198
          %v1399 = vpack.c.b16 %v1203, %v1199
          %v1400 = vpack.c.b16 %v1204, %v1200
          %v1401 = vpack.c.b16 %v1205, %v1201
          %v1402 = vpack.c.b16 %v1210, %v1206
          %v1403 = vpack.c.b16 %v1211, %v1207
          %v1404 = vpack.c.b16 %v1212, %v1208
          %v1405 = vpack.c.b16 %v1213, %v1209
          %v1406 = vpack.c.b16 %v1218, %v1214
          %v1407 = vpack.c.b16 %v1219, %v1215
          %v1408 = vpack.c.b16 %v1220, %v1216
          %v1409 = vpack.c.b16 %v1221, %v1217
          %v1410 = vpack.c.b16 %v1226, %v1222
          %v1411 = vpack.c.b16 %v1227, %v1223
          %v1412 = vpack.c.b16 %v1228, %v1224
          %v1413 = vpack.c.b16 %v1229, %v1225
          %v1414 = vpack.c.b16 %v1234, %v1230
          %v1415 = vpack.c.b16 %v1235, %v1231
          %v1416 = vpack.c.b16 %v1236, %v1232
          %v1417 = vpack.c.b16 %v1237, %v1233
          %v1418 = vpack.c.b16 %v1242, %v1238
          %v1419 = vpack.c.b16 %v1243, %v1239
          %v1420 = vpack.c.b16 %v1244, %v1240
          %v1421 = vpack.c.b16 %v1245, %v1241
          %v1422 = vpack.c.b16 %v1250, %v1246
          %v1423 = vpack.c.b16 %v1251, %v1247
          %v1424 = vpack.c.b16 %v1252, %v1248
          %v1425 = vpack.c.b16 %v1253, %v1249
          %v1426 = vpack.c.b16 %v1258, %v1254
          %v1427 = vpack.c.b16 %v1259, %v1255
          %v1428 = vpack.c.b16 %v1260, %v1256
          %v1429 = vpack.c.b16 %v1261, %v1257
          %v1430 = vpack.c.b16 %v1266, %v1262
          %v1431 = vpack.c.b16 %v1267, %v1263
          %v1432 = vpack.c.b16 %v1268, %v1264
          %v1433 = vpack.c.b16 %v1269, %v1265
          %v1434 = vpack.c.b16 %v1274, %v1270
          %v1435 = vpack.c.b16 %v1275, %v1271
          %v1436 = vpack.c.b16 %v1276, %v1272
          %v1437 = vpack.c.b16 %v1277, %v1273
          %v1438 = vpack.c.b16 %v1282, %v1278
          %v1439 = vpack.c.b16 %v1283, %v1279
          %v1440 = vpack.c.b16 %v1284, %v1280
          %v1441 = vpack.c.b16 %v1285, %v1281
          %v1442 = vpack.c.b16 %v1290, %v1286
          %v1443 = vpack.c.b16 %v1291, %v1287
          %v1444 = vpack.c.b16 %v1292, %v1288
          %v1445 = vpack.c.b16 %v1293, %v1289
          %v1446 = vpack.c.b16 %v1298, %v1294
          %v1447 = vpack.c.b16 %v1299, %v1295
          %v1448 = vpack.c.b16 %v1300, %v1296
          %v1449 = vpack.c.b16 %v1301, %v1297
          %v1450 = vpack.c.b16 %v1306, %v1302
          %v1451 = vpack.c.b16 %v1307, %v1303
          %v1452 = vpack.c.b16 %v1308, %v1304
          %v1453 = vpack.c.b16 %v1309, %v1305
          %v1454 = vpack.c.b16 %v1314, %v1310
          %v1455 = vpack.c.b16 %v1315, %v1311
          %v1456 = vpack.c.b16 %v1316, %v1312
          %v1457 = vpack.c.b16 %v1317, %v1313
          %v1458 = vpack.c.b16 %v1322, %v1318
          %v1459 = vpack.c.b16 %v1323, %v1319
          %v1460 = vpack.c.b16 %v1324, %v1320
          %v1461 = vpack.c.b16 %v1325, %v1321
          %v1462 = vpack.c.b16 %v1330, %v1326
          %v1463 = vpack.c.b16 %v1331, %v1327
          %v1464 = vpack.c.b16 %v1332, %v1328
          %v1465 = vpack.c.b16 %v1333, %v1329
          %v1466 = vpack.c.b16 %v1338, %v1334
          %v1467 = vpack.c.b16 %v1339, %v1335
          %v1468 = vpack.c.b16 %v1340, %v1336
          %v1469 = vpack.c.b16 %v1341, %v1337
          %1598 = vmatprep.subr.bf16.mxu0 %v1371
          %1599 = vmatpush1.bf16.msra.mxu0 %v1370
          %1600 = vmatprep.subr.bf16.mxu0 %v1367
          %1601 = vmatpush1.bf16.msra.mxu0 %v1366
          %1602 = vmatprep.subr.bf16.mxu0 %v1363
          %1603 = vmatpush1.bf16.msra.mxu0 %v1362
          %1604 = vmatprep.subr.bf16.mxu0 %v1359
          %1605 = vmatpush1.bf16.msra.mxu0 %v1358
          %1606 = vmatprep.subr.bf16.mxu0 %v1355
          %1607 = vmatpush1.bf16.msra.mxu0 %v1354
          %1608 = vmatprep.subr.bf16.mxu0 %v1351
          %1609 = vmatpush1.bf16.msra.mxu0 %v1350
          %1610 = vmatprep.subr.bf16.mxu0 %v1347
          %1611 = vmatpush1.bf16.msra.mxu0 %v1346
          %1612 = vmatprep.subr.bf16.mxu0 %v1343
          %1613 = vmatpush1.bf16.msra.mxu0 %v1342
          %1614 = vmatprep.subr.bf16.mxu0 %v1403
          %1615 = vmatpush2.bf16.msra.mxu0 %v1402
          %1616 = vmatprep.subr.bf16.mxu0 %v1399
          %1617 = vmatpush2.bf16.msra.mxu0 %v1398
          %1618 = vmatprep.subr.bf16.mxu0 %v1395
          %1619 = vmatpush2.bf16.msra.mxu0 %v1394
          %1620 = vmatprep.subr.bf16.mxu0 %v1391
          %1621 = vmatpush2.bf16.msra.mxu0 %v1390
          %1622 = vmatprep.subr.bf16.mxu0 %v1387
          %1623 = vmatpush2.bf16.msra.mxu0 %v1386
          %1624 = vmatprep.subr.bf16.mxu0 %v1383
          %1625 = vmatpush2.bf16.msra.mxu0 %v1382
          %1626 = vmatprep.subr.bf16.mxu0 %v1379
          %1627 = vmatpush2.bf16.msra.mxu0 %v1378
          %1628 = vmatprep.subr.bf16.mxu0 %v1375
          %1629 = vmatpush2.bf16.msra.mxu0 %v1374
          %1630 = vmatprep.mubr.bf16.mxu0 %v819
          %1631 = vmatmul.mubr.bf16.gmra.mxu0 %v818
          %v1632 = vpop.f32.mrf.mxu0
          %v1633 = vadd.f32 0.0, %v1632
          %v1634 = vpop.f32.mrf.mxu0
          %v1635 = vadd.f32 0.0, %v1634
          %v1636 = vpop.f32.mrf.mxu0
          %v1637 = vadd.f32 0.0, %v1636
          %v1638 = vpop.f32.mrf.mxu0
          %v1639 = vadd.f32 0.0, %v1638
          %1640 = vmatprep.mubr.bf16.mxu0 %v823
          %1641 = vmatmul.mubr.bf16.gmra.mxu0 %v822
          %v1642 = vpop.f32.mrf.mxu0
          %v1643 = vadd.f32 0.0, %v1642
          %v1644 = vpop.f32.mrf.mxu0
          %v1645 = vadd.f32 0.0, %v1644
          %v1646 = vpop.f32.mrf.mxu0
          %v1647 = vadd.f32 0.0, %v1646
          %v1648 = vpop.f32.mrf.mxu0
          %v1649 = vadd.f32 0.0, %v1648
          %1650 = vmatprep.mubr.bf16.mxu0 %v827
          %1651 = vmatmul.mubr.bf16.gmra.mxu0 %v826
          %v1652 = vpop.f32.mrf.mxu0
          %v1653 = vadd.f32 0.0, %v1652
          %v1654 = vpop.f32.mrf.mxu0
          %v1655 = vadd.f32 0.0, %v1654
          %v1656 = vpop.f32.mrf.mxu0
          %v1657 = vadd.f32 0.0, %v1656
          %v1658 = vpop.f32.mrf.mxu0
          %v1659 = vadd.f32 0.0, %v1658
          %1660 = vdwg.mxu0
          %1661 = vmatprep.subr.bf16.mxu0 %v1435
          %1662 = vmatpush1.bf16.msra.mxu0 %v1434
          %1663 = vmatprep.subr.bf16.mxu0 %v1431
          %1664 = vmatpush1.bf16.msra.mxu0 %v1430
          %1665 = vmatprep.subr.bf16.mxu0 %v1427
          %1666 = vmatpush1.bf16.msra.mxu0 %v1426
          %1667 = vmatprep.subr.bf16.mxu0 %v1423
          %1668 = vmatpush1.bf16.msra.mxu0 %v1422
          %1669 = vmatprep.subr.bf16.mxu0 %v1419
          %1670 = vmatpush1.bf16.msra.mxu0 %v1418
          %1671 = vmatprep.subr.bf16.mxu0 %v1415
          %1672 = vmatpush1.bf16.msra.mxu0 %v1414
          %1673 = vmatprep.subr.bf16.mxu0 %v1411
          %1674 = vmatpush1.bf16.msra.mxu0 %v1410
          %1675 = vmatprep.subr.bf16.mxu0 %v1407
          %1676 = vmatpush1.bf16.msra.mxu0 %v1406
          %1677 = vmatprep.subr.bf16.mxu0 %v1467
          %1678 = vmatpush2.bf16.msra.mxu0 %v1466
          %1679 = vmatprep.subr.bf16.mxu0 %v1463
          %1680 = vmatpush2.bf16.msra.mxu0 %v1462
          %1681 = vmatprep.subr.bf16.mxu0 %v1459
          %1682 = vmatpush2.bf16.msra.mxu0 %v1458
          %1683 = vmatprep.subr.bf16.mxu0 %v1455
          %1684 = vmatpush2.bf16.msra.mxu0 %v1454
          %1685 = vmatprep.subr.bf16.mxu0 %v1451
          %1686 = vmatpush2.bf16.msra.mxu0 %v1450
          %1687 = vmatprep.subr.bf16.mxu0 %v1447
          %1688 = vmatpush2.bf16.msra.mxu0 %v1446
          %1689 = vmatprep.subr.bf16.mxu0 %v1443
          %1690 = vmatpush2.bf16.msra.mxu0 %v1442
          %1691 = vmatprep.subr.bf16.mxu0 %v1439
          %1692 = vmatpush2.bf16.msra.mxu0 %v1438
          %1693 = vmatprep.mubr.bf16.mxu0 %v821
          %1694 = vmatmul.mubr.bf16.gmra.mxu0 %v820
          %v1695 = vpop.f32.mrf.mxu0
          %v1696 = vadd.f32 %v1633, %v1695
          %v1697 = vpop.f32.mrf.mxu0
          %v1698 = vadd.f32 %v1635, %v1697
          %v1699 = vpop.f32.mrf.mxu0
          %v1700 = vadd.f32 %v1637, %v1699
          %v1701 = vpop.f32.mrf.mxu0
          %v1702 = vadd.f32 %v1639, %v1701
          %1703 = vmatprep.mubr.bf16.mxu0 %v825
          %1704 = vmatmul.mubr.bf16.gmra.mxu0 %v824
          %v1705 = vpop.f32.mrf.mxu0
          %v1706 = vadd.f32 %v1643, %v1705
          %v1707 = vpop.f32.mrf.mxu0
          %v1708 = vadd.f32 %v1645, %v1707
          %v1709 = vpop.f32.mrf.mxu0
          %v1710 = vadd.f32 %v1647, %v1709
          %v1711 = vpop.f32.mrf.mxu0
          %v1712 = vadd.f32 %v1649, %v1711
          %1713 = vmatprep.mubr.bf16.mxu0 %v829
          %1714 = vmatmul.mubr.bf16.gmra.mxu0 %v828
          %v1715 = vpop.f32.mrf.mxu0
          %v1716 = vadd.f32 %v1653, %v1715
          %v1717 = vpop.f32.mrf.mxu0
          %v1718 = vadd.f32 %v1655, %v1717
          %v1719 = vpop.f32.mrf.mxu0
          %v1720 = vadd.f32 %v1657, %v1719
          %v1721 = vpop.f32.mrf.mxu0
          %v1722 = vadd.f32 %v1659, %v1721
          %1723 = vdwg.mxu0
          %1724 = vmatprep.subr.bf16.mxu0 %v1373
          %1725 = vmatpush1.bf16.msra.mxu0 %v1372
          %1726 = vmatprep.subr.bf16.mxu0 %v1369
          %1727 = vmatpush1.bf16.msra.mxu0 %v1368
          %1728 = vmatprep.subr.bf16.mxu0 %v1365
          %1729 = vmatpush1.bf16.msra.mxu0 %v1364
          %1730 = vmatprep.subr.bf16.mxu0 %v1361
          %1731 = vmatpush1.bf16.msra.mxu0 %v1360
          %1732 = vmatprep.subr.bf16.mxu0 %v1357
          %1733 = vmatpush1.bf16.msra.mxu0 %v1356
          %1734 = vmatprep.subr.bf16.mxu0 %v1353
          %1735 = vmatpush1.bf16.msra.mxu0 %v1352
          %1736 = vmatprep.subr.bf16.mxu0 %v1349
          %1737 = vmatpush1.bf16.msra.mxu0 %v1348
          %1738 = vmatprep.subr.bf16.mxu0 %v1345
          %1739 = vmatpush1.bf16.msra.mxu0 %v1344
          %1740 = vmatprep.subr.bf16.mxu0 %v1405
          %1741 = vmatpush2.bf16.msra.mxu0 %v1404
          %1742 = vmatprep.subr.bf16.mxu0 %v1401
          %1743 = vmatpush2.bf16.msra.mxu0 %v1400
          %1744 = vmatprep.subr.bf16.mxu0 %v1397
          %1745 = vmatpush2.bf16.msra.mxu0 %v1396
          %1746 = vmatprep.subr.bf16.mxu0 %v1393
          %1747 = vmatpush2.bf16.msra.mxu0 %v1392
          %1748 = vmatprep.subr.bf16.mxu0 %v1389
          %1749 = vmatpush2.bf16.msra.mxu0 %v1388
          %1750 = vmatprep.subr.bf16.mxu0 %v1385
          %1751 = vmatpush2.bf16.msra.mxu0 %v1384
          %1752 = vmatprep.subr.bf16.mxu0 %v1381
          %1753 = vmatpush2.bf16.msra.mxu0 %v1380
          %1754 = vmatprep.subr.bf16.mxu0 %v1377
          %1755 = vmatpush2.bf16.msra.mxu0 %v1376
          %1756 = vmatprep.mubr.bf16.mxu0 %v819
          %1757 = vmatmul.mubr.bf16.gmra.mxu0 %v818
          %v1758 = vpop.f32.mrf.mxu0
          %v1759 = vadd.f32 0.0, %v1758
          %v1760 = vpop.f32.mrf.mxu0
          %v1761 = vadd.f32 0.0, %v1760
          %v1762 = vpop.f32.mrf.mxu0
          %v1763 = vadd.f32 0.0, %v1762
          %v1764 = vpop.f32.mrf.mxu0
          %v1765 = vadd.f32 0.0, %v1764
          %1766 = vmatprep.mubr.bf16.mxu0 %v823
          %1767 = vmatmul.mubr.bf16.gmra.mxu0 %v822
          %v1768 = vpop.f32.mrf.mxu0
          %v1769 = vadd.f32 0.0, %v1768
          %v1770 = vpop.f32.mrf.mxu0
          %v1771 = vadd.f32 0.0, %v1770
          %v1772 = vpop.f32.mrf.mxu0
          %v1773 = vadd.f32 0.0, %v1772
          %v1774 = vpop.f32.mrf.mxu0
          %v1775 = vadd.f32 0.0, %v1774
          %1776 = vmatprep.mubr.bf16.mxu0 %v827
          %1777 = vmatmul.mubr.bf16.gmra.mxu0 %v826
          %v1778 = vpop.f32.mrf.mxu0
          %v1779 = vadd.f32 0.0, %v1778
          %v1780 = vpop.f32.mrf.mxu0
          %v1781 = vadd.f32 0.0, %v1780
          %v1782 = vpop.f32.mrf.mxu0
          %v1783 = vadd.f32 0.0, %v1782
          %v1784 = vpop.f32.mrf.mxu0
          %v1785 = vadd.f32 0.0, %v1784
          %1786 = vdwg.mxu0
          %1787 = vmatprep.subr.bf16.mxu0 %v1437
          %1788 = vmatpush1.bf16.msra.mxu0 %v1436
          %1789 = vmatprep.subr.bf16.mxu0 %v1433
          %1790 = vmatpush1.bf16.msra.mxu0 %v1432
          %1791 = vmatprep.subr.bf16.mxu0 %v1429
          %1792 = vmatpush1.bf16.msra.mxu0 %v1428
          %1793 = vmatprep.subr.bf16.mxu0 %v1425
          %1794 = vmatpush1.bf16.msra.mxu0 %v1424
          %1795 = vmatprep.subr.bf16.mxu0 %v1421
          %1796 = vmatpush1.bf16.msra.mxu0 %v1420
          %1797 = vmatprep.subr.bf16.mxu0 %v1417
          %1798 = vmatpush1.bf16.msra.mxu0 %v1416
          %1799 = vmatprep.subr.bf16.mxu0 %v1413
          %1800 = vmatpush1.bf16.msra.mxu0 %v1412
          %1801 = vmatprep.subr.bf16.mxu0 %v1409
          %1802 = vmatpush1.bf16.msra.mxu0 %v1408
          %1803 = vmatprep.subr.bf16.mxu0 %v1469
          %1804 = vmatpush2.bf16.msra.mxu0 %v1468
          %1805 = vmatprep.subr.bf16.mxu0 %v1465
          %1806 = vmatpush2.bf16.msra.mxu0 %v1464
          %1807 = vmatprep.subr.bf16.mxu0 %v1461
          %1808 = vmatpush2.bf16.msra.mxu0 %v1460
          %1809 = vmatprep.subr.bf16.mxu0 %v1457
          %1810 = vmatpush2.bf16.msra.mxu0 %v1456
          %1811 = vmatprep.subr.bf16.mxu0 %v1453
          %1812 = vmatpush2.bf16.msra.mxu0 %v1452
          %1813 = vmatprep.subr.bf16.mxu0 %v1449
          %1814 = vmatpush2.bf16.msra.mxu0 %v1448
          %1815 = vmatprep.subr.bf16.mxu0 %v1445
          %1816 = vmatpush2.bf16.msra.mxu0 %v1444
          %1817 = vmatprep.subr.bf16.mxu0 %v1441
          %1818 = vmatpush2.bf16.msra.mxu0 %v1440
          %1819 = vmatprep.mubr.bf16.mxu0 %v821
          %1820 = vmatmul.mubr.bf16.gmra.mxu0 %v820
          %v1821 = vpop.f32.mrf.mxu0
          %v1822 = vadd.f32 %v1759, %v1821
          %v1823 = vpop.f32.mrf.mxu0
          %v1824 = vadd.f32 %v1761, %v1823
          %v1825 = vpop.f32.mrf.mxu0
          %v1826 = vadd.f32 %v1763, %v1825
          %v1827 = vpop.f32.mrf.mxu0
          %v1828 = vadd.f32 %v1765, %v1827
          %1829 = vmatprep.mubr.bf16.mxu0 %v825
          %1830 = vmatmul.mubr.bf16.gmra.mxu0 %v824
          %v1831 = vpop.f32.mrf.mxu0
          %v1832 = vadd.f32 %v1769, %v1831
          %v1833 = vpop.f32.mrf.mxu0
          %v1834 = vadd.f32 %v1771, %v1833
          %v1835 = vpop.f32.mrf.mxu0
          %v1836 = vadd.f32 %v1773, %v1835
          %v1837 = vpop.f32.mrf.mxu0
          %v1838 = vadd.f32 %v1775, %v1837
          %1839 = vmatprep.mubr.bf16.mxu0 %v829
          %1840 = vmatmul.mubr.bf16.gmra.mxu0 %v828
          %v1841 = vpop.f32.mrf.mxu0
          %v1842 = vadd.f32 %v1779, %v1841
          %v1843 = vpop.f32.mrf.mxu0
          %v1844 = vadd.f32 %v1781, %v1843
          %v1845 = vpop.f32.mrf.mxu0
          %v1846 = vadd.f32 %v1783, %v1845
          %v1847 = vpop.f32.mrf.mxu0
          %v1848 = vadd.f32 %v1785, %v1847
          %1849 = vdwg.mxu0
          %s1850 = smul.u32 %s21, 4
          %s1851 = scalar_lea.vmem [#allocation8], %s1850
          %v1852 = vld [vmem:[%s1851] sm:$0xf]
          %s1853 = sadd.s32 %s21, 4
          %s1854 = smul.u32 %s1853, 4
          %s1855 = scalar_lea.vmem [#allocation8], %s1854
          %v1856 = vld [vmem:[%s1855] sm:$0xf]
          %v1857 = vadd.f32 %v1696, %v1700
          %v1858 = vadd.f32 %v1857, %v1706
          %v1859 = vadd.f32 %v1858, %v1710
          %v1860 = vadd.f32 %v1859, %v1716
          %v1861 = vadd.f32 %v1860, %v1720
          %v1862 = vrot.slane %v1861, 4
          %v1863 = vadd.f32 %v1861, %v1862
          %v1864 = vrot.slane %v1863, 2
          %v1865 = vadd.f32 %v1863, %v1864
          %v1866 = vrot.slane %v1865, 1
          %v1867 = vadd.f32 %v1865, %v1866
          %v1868 = vadd.f32 %v1698, %v1702
          %v1869 = vadd.f32 %v1868, %v1708
          %v1870 = vadd.f32 %v1869, %v1712
          %v1871 = vadd.f32 %v1870, %v1718
          %v1872 = vadd.f32 %v1871, %v1722
          %v1873 = vrot.slane %v1872, 4
          %v1874 = vadd.f32 %v1872, %v1873
          %v1875 = vrot.slane %v1874, 2
          %v1876 = vadd.f32 %v1874, %v1875
          %v1877 = vrot.slane %v1876, 1
          %v1878 = vadd.f32 %v1876, %v1877
          %v1879 = vadd.f32 %v1822, %v1826
          %v1880 = vadd.f32 %v1879, %v1832
          %v1881 = vadd.f32 %v1880, %v1836
          %v1882 = vadd.f32 %v1881, %v1842
          %v1883 = vadd.f32 %v1882, %v1846
          %v1884 = vrot.slane %v1883, 4
          %v1885 = vadd.f32 %v1883, %v1884
          %v1886 = vrot.slane %v1885, 2
          %v1887 = vadd.f32 %v1885, %v1886
          %v1888 = vrot.slane %v1887, 1
          %v1889 = vadd.f32 %v1887, %v1888
          %v1890 = vadd.f32 %v1824, %v1828
          %v1891 = vadd.f32 %v1890, %v1834
          %v1892 = vadd.f32 %v1891, %v1838
          %v1893 = vadd.f32 %v1892, %v1844
          %v1894 = vadd.f32 %v1893, %v1848
          %v1895 = vrot.slane %v1894, 4
          %v1896 = vadd.f32 %v1894, %v1895
          %v1897 = vrot.slane %v1896, 2
          %v1898 = vadd.f32 %v1896, %v1897
          %v1899 = vrot.slane %v1898, 1
          %v1900 = vadd.f32 %v1898, %v1899
          %v1901 = vmul.f32 %v1696, %v1696
          %v1902 = vmul.f32 %v1698, %v1698
          %v1903 = vmul.f32 %v1822, %v1822
          %v1904 = vmul.f32 %v1824, %v1824
          %v1905 = vmul.f32 %v1700, %v1700
          %v1906 = vmul.f32 %v1702, %v1702
          %v1907 = vmul.f32 %v1826, %v1826
          %v1908 = vmul.f32 %v1828, %v1828
          %v1909 = vmul.f32 %v1706, %v1706
          %v1910 = vmul.f32 %v1708, %v1708
          %v1911 = vmul.f32 %v1832, %v1832
          %v1912 = vmul.f32 %v1834, %v1834
          %v1913 = vmul.f32 %v1710, %v1710
          %v1914 = vmul.f32 %v1712, %v1712
          %v1915 = vmul.f32 %v1836, %v1836
          %v1916 = vmul.f32 %v1838, %v1838
          %v1917 = vmul.f32 %v1716, %v1716
          %v1918 = vmul.f32 %v1718, %v1718
          %v1919 = vmul.f32 %v1842, %v1842
          %v1920 = vmul.f32 %v1844, %v1844
          %v1921 = vmul.f32 %v1720, %v1720
          %v1922 = vmul.f32 %v1722, %v1722
          %v1923 = vmul.f32 %v1846, %v1846
          %v1924 = vmul.f32 %v1848, %v1848
          %v1925 = vadd.f32 %v1901, %v1905
          %v1926 = vadd.f32 %v1925, %v1909
          %v1927 = vadd.f32 %v1926, %v1913
          %v1928 = vadd.f32 %v1927, %v1917
          %v1929 = vadd.f32 %v1928, %v1921
          %v1930 = vrot.slane %v1929, 4
          %v1931 = vadd.f32 %v1929, %v1930
          %v1932 = vrot.slane %v1931, 2
          %v1933 = vadd.f32 %v1931, %v1932
          %v1934 = vrot.slane %v1933, 1
          %v1935 = vadd.f32 %v1933, %v1934
          %v1936 = vadd.f32 %v1902, %v1906
          %v1937 = vadd.f32 %v1936, %v1910
          %v1938 = vadd.f32 %v1937, %v1914
          %v1939 = vadd.f32 %v1938, %v1918
          %v1940 = vadd.f32 %v1939, %v1922
          %v1941 = vrot.slane %v1940, 4
          %v1942 = vadd.f32 %v1940, %v1941
          %v1943 = vrot.slane %v1942, 2
          %v1944 = vadd.f32 %v1942, %v1943
          %v1945 = vrot.slane %v1944, 1
          %v1946 = vadd.f32 %v1944, %v1945
          %v1947 = vadd.f32 %v1903, %v1907
          %v1948 = vadd.f32 %v1947, %v1911
          %v1949 = vadd.f32 %v1948, %v1915
          %v1950 = vadd.f32 %v1949, %v1919
          %v1951 = vadd.f32 %v1950, %v1923
          %v1952 = vrot.slane %v1951, 4
          %v1953 = vadd.f32 %v1951, %v1952
          %v1954 = vrot.slane %v1953, 2
          %v1955 = vadd.f32 %v1953, %v1954
          %v1956 = vrot.slane %v1955, 1
          %v1957 = vadd.f32 %v1955, %v1956
          %v1958 = vadd.f32 %v1904, %v1908
          %v1959 = vadd.f32 %v1958, %v1912
          %v1960 = vadd.f32 %v1959, %v1916
          %v1961 = vadd.f32 %v1960, %v1920
          %v1962 = vadd.f32 %v1961, %v1924
          %v1963 = vrot.slane %v1962, 4
          %v1964 = vadd.f32 %v1962, %v1963
          %v1965 = vrot.slane %v1964, 2
          %v1966 = vadd.f32 %v1964, %v1965
          %v1967 = vrot.slane %v1966, 1
          %v1968 = vadd.f32 %v1966, %v1967
          %v1969 = vmul.f32 %v1867, 0.020833334
          %v1970 = vmul.f32 %v1878, 0.020833334
          %v1971 = vmul.f32 %v1889, 0.020833334
          %v1972 = vmul.f32 %v1900, 0.020833334
          %v1973 = vmul.f32 %v1935, 0.020833334
          %v1974 = vmul.f32 %v1946, 0.020833334
          %v1975 = vmul.f32 %v1957, 0.020833334
          %v1976 = vmul.f32 %v1968, 0.020833334
          %v1977 = vmul.f32 %v1969, %v1969
          %v1978 = vmul.f32 %v1970, %v1970
          %v1979 = vmul.f32 %v1971, %v1971
          %v1980 = vmul.f32 %v1972, %v1972
          %v1981 = vsub.f32 %v1973, %v1977
          %v1982 = vsub.f32 %v1974, %v1978
          %v1983 = vsub.f32 %v1975, %v1979
          %v1984 = vsub.f32 %v1976, %v1980
          %v1985 = vmax.f32 %v1981, 0.0
          %v1986 = vmax.f32 %v1982, 0.0
          %v1987 = vmax.f32 %v1983, 0.0
          %v1988 = vmax.f32 %v1984, 0.0
          %v1989 = vadd.f32 %v1985, 1e-05
          %v1990 = vadd.f32 %v1986, 1e-05
          %v1991 = vadd.f32 %v1987, 1e-05
          %v1992 = vadd.f32 %v1988, 1e-05
          %v1993 = vrsqrt.pop %v1989
          %v1994 = vrsqrt.pop %v1990
          %v1995 = vrsqrt.pop %v1991
          %v1996 = vrsqrt.pop %v1992
          %v2001 = vcombine.low %v1993, %v1994
          %v2002 = vcombine.low %v1995, %v1996
          %v2004 = vunpack.c.l.s4 1966171168
          %v2005 = vunpack.c.0.s8 %v2004
          %v2006 = vlaneseq
          %v2007 = vshrl.u32 %v2006, 7
          %v2008 = vsub.s32 %v2005, %v2007
          %v2009 = vrot.slane %v2001, %v2008
          %v2011 = vunpack.c.l.s4 1966171168
          %v2012 = vunpack.c.0.s8 %v2011
          %v2013 = vlaneseq
          %v2014 = vshrl.u32 %v2013, 7
          %v2015 = vsub.s32 %v2012, %v2014
          %v2016 = vrot.slane %v2002, %v2015
          %v2017 = vcombine.low %v2009, %v2016
          %v2019 = vunpack.c.l.s4 1966171168
          %v2020 = vunpack.c.0.s8 %v2019
          %v2021 = vlaneseq
          %v2022 = vshrl.u32 %v2021, 7
          %v2023 = vsub.s32 %v2020, %v2022
          %v2024 = vrot.slane %v2017, %v2023
          %v2026 = vmul.f32 %v1852, %v2024
          %v2028 = vlaneseq
          %v2029 = vshrl.u32 %v2028, 7
          %v2030 = vsub.s32 0, %v2029
          %v2031 = vrot.slane %v2026, %v2030
          %v2032 = vlaneseq
          %v2033 = vshrl.u32 %v2032, 7
          %v2034 = vsub.s32 1, %v2033
          %v2035 = vrot.slane %v2026, %v2034
          %v2036 = vlaneseq
          %v2037 = vshrl.u32 %v2036, 7
          %v2038 = vsub.s32 2, %v2037
          %v2039 = vrot.slane %v2026, %v2038
          %v2040 = vlaneseq
          %v2041 = vshrl.u32 %v2040, 7
          %v2042 = vsub.s32 3, %v2041
          %v2043 = vrot.slane %v2026, %v2042
          %v2048 = vmul.f32 %v1969, %v2031
          %v2049 = vmul.f32 %v1970, %v2035
          %v2050 = vmul.f32 %v1971, %v2039
          %v2051 = vmul.f32 %v1972, %v2043
          %v2056 = vcombine.low %v2048, %v2049
          %v2057 = vcombine.low %v2050, %v2051
          %v2059 = vunpack.c.l.s4 1966171168
          %v2060 = vunpack.c.0.s8 %v2059
          %v2061 = vlaneseq
          %v2062 = vshrl.u32 %v2061, 7
          %v2063 = vsub.s32 %v2060, %v2062
          %v2064 = vrot.slane %v2056, %v2063
          %v2066 = vunpack.c.l.s4 1966171168
          %v2067 = vunpack.c.0.s8 %v2066
          %v2068 = vlaneseq
          %v2069 = vshrl.u32 %v2068, 7
          %v2070 = vsub.s32 %v2067, %v2069
          %v2071 = vrot.slane %v2057, %v2070
          %v2072 = vcombine.low %v2064, %v2071
          %v2074 = vunpack.c.l.s4 1966171168
          %v2075 = vunpack.c.0.s8 %v2074
          %v2076 = vlaneseq
          %v2077 = vshrl.u32 %v2076, 7
          %v2078 = vsub.s32 %v2075, %v2077
          %v2079 = vrot.slane %v2072, %v2078
          %v2081 = vsub.f32 %v1856, %v2079
          %v2082 = vmul.f32 %v1696, %v2031
          %v2083 = vmul.f32 %v1698, %v2035
          %v2084 = vmul.f32 %v1822, %v2039
          %v2085 = vmul.f32 %v1824, %v2043
          %v2086 = vmul.f32 %v1700, %v2031
          %v2087 = vmul.f32 %v1702, %v2035
          %v2088 = vmul.f32 %v1826, %v2039
          %v2089 = vmul.f32 %v1828, %v2043
          %v2090 = vmul.f32 %v1706, %v2031
          %v2091 = vmul.f32 %v1708, %v2035
          %v2092 = vmul.f32 %v1832, %v2039
          %v2093 = vmul.f32 %v1834, %v2043
          %v2094 = vmul.f32 %v1710, %v2031
          %v2095 = vmul.f32 %v1712, %v2035
          %v2096 = vmul.f32 %v1836, %v2039
          %v2097 = vmul.f32 %v1838, %v2043
          %v2098 = vmul.f32 %v1716, %v2031
          %v2099 = vmul.f32 %v1718, %v2035
          %v2100 = vmul.f32 %v1842, %v2039
          %v2101 = vmul.f32 %v1844, %v2043
          %v2102 = vmul.f32 %v1720, %v2031
          %v2103 = vmul.f32 %v1722, %v2035
          %v2104 = vmul.f32 %v1846, %v2039
          %v2105 = vmul.f32 %v1848, %v2043
          %v2107 = vlaneseq
          %v2108 = vshrl.u32 %v2107, 7
          %v2109 = vsub.s32 0, %v2108
          %v2110 = vrot.slane %v2081, %v2109
          %v2111 = vlaneseq
          %v2112 = vshrl.u32 %v2111, 7
          %v2113 = vsub.s32 1, %v2112
          %v2114 = vrot.slane %v2081, %v2113
          %v2115 = vlaneseq
          %v2116 = vshrl.u32 %v2115, 7
          %v2117 = vsub.s32 2, %v2116
          %v2118 = vrot.slane %v2081, %v2117
          %v2119 = vlaneseq
          %v2120 = vshrl.u32 %v2119, 7
          %v2121 = vsub.s32 3, %v2120
          %v2122 = vrot.slane %v2081, %v2121
          %v2127 = vadd.f32 %v2082, %v2110
          %v2128 = vadd.f32 %v2083, %v2114
          %v2129 = vadd.f32 %v2084, %v2118
          %v2130 = vadd.f32 %v2085, %v2122
          %v2131 = vadd.f32 %v2086, %v2110
          %v2132 = vadd.f32 %v2087, %v2114
          %v2133 = vadd.f32 %v2088, %v2118
          %v2134 = vadd.f32 %v2089, %v2122
          %v2135 = vadd.f32 %v2090, %v2110
          %v2136 = vadd.f32 %v2091, %v2114
          %v2137 = vadd.f32 %v2092, %v2118
          %v2138 = vadd.f32 %v2093, %v2122
          %v2139 = vadd.f32 %v2094, %v2110
          %v2140 = vadd.f32 %v2095, %v2114
          %v2141 = vadd.f32 %v2096, %v2118
          %v2142 = vadd.f32 %v2097, %v2122
          %v2143 = vadd.f32 %v2098, %v2110
          %v2144 = vadd.f32 %v2099, %v2114
          %v2145 = vadd.f32 %v2100, %v2118
          %v2146 = vadd.f32 %v2101, %v2122
          %v2147 = vadd.f32 %v2102, %v2110
          %v2148 = vadd.f32 %v2103, %v2114
          %v2149 = vadd.f32 %v2104, %v2118
          %v2150 = vadd.f32 %v2105, %v2122
          %v2151 = vmax.f32 %v2127, 0.0
          %v2152 = vmax.f32 %v2128, 0.0
          %v2153 = vmax.f32 %v2129, 0.0
          %v2154 = vmax.f32 %v2130, 0.0
          %v2155 = vmax.f32 %v2131, 0.0
          %v2156 = vmax.f32 %v2132, 0.0
          %v2157 = vmax.f32 %v2133, 0.0
          %v2158 = vmax.f32 %v2134, 0.0
          %v2159 = vmax.f32 %v2135, 0.0
          %v2160 = vmax.f32 %v2136, 0.0
          %v2161 = vmax.f32 %v2137, 0.0
          %v2162 = vmax.f32 %v2138, 0.0
          %v2163 = vmax.f32 %v2139, 0.0
          %v2164 = vmax.f32 %v2140, 0.0
          %v2165 = vmax.f32 %v2141, 0.0
          %v2166 = vmax.f32 %v2142, 0.0
          %v2167 = vmax.f32 %v2143, 0.0
          %v2168 = vmax.f32 %v2144, 0.0
          %v2169 = vmax.f32 %v2145, 0.0
          %v2170 = vmax.f32 %v2146, 0.0
          %v2171 = vmax.f32 %v2147, 0.0
          %v2172 = vmax.f32 %v2148, 0.0
          %v2173 = vmax.f32 %v2149, 0.0
          %v2174 = vmax.f32 %v2150, 0.0
          %v2175 = vadd.f32 %v2151, %v794
          %v2176 = vadd.f32 %v2152, %v795
          %v2177 = vadd.f32 %v2153, %v796
          %v2178 = vadd.f32 %v2154, %v797
          %v2179 = vadd.f32 %v2155, %v798
          %v2180 = vadd.f32 %v2156, %v799
          %v2181 = vadd.f32 %v2157, %v800
          %v2182 = vadd.f32 %v2158, %v801
          %v2183 = vadd.f32 %v2159, %v802
          %v2184 = vadd.f32 %v2160, %v803
          %v2185 = vadd.f32 %v2161, %v804
          %v2186 = vadd.f32 %v2162, %v805
          %v2187 = vadd.f32 %v2163, %v806
          %v2188 = vadd.f32 %v2164, %v807
          %v2189 = vadd.f32 %v2165, %v808
          %v2190 = vadd.f32 %v2166, %v809
          %v2191 = vadd.f32 %v2167, %v810
          %v2192 = vadd.f32 %v2168, %v811
          %v2193 = vadd.f32 %v2169, %v812
          %v2194 = vadd.f32 %v2170, %v813
          %v2195 = vadd.f32 %v2171, %v814
          %v2196 = vadd.f32 %v2172, %v815
          %v2197 = vadd.f32 %v2173, %v816
          %v2198 = vadd.f32 %v2174, %v817
          %2199 = vst [vmem:[#allocation2] sm:$0xff] %v2175
          %2200 = vst [vmem:[#allocation2 + $0x8] sm:$0xff] %v2176
          %2201 = vst [vmem:[#allocation2 + $0x10] sm:$0xff] %v2177
          %2202 = vst [vmem:[#allocation2 + $0x18] sm:$0xff] %v2178
          %2203 = vst [vmem:[#allocation2 + $0x20] sm:$0xff] %v2179
          %2204 = vst [vmem:[#allocation2 + $0x28] sm:$0xff] %v2180
          %2205 = vst [vmem:[#allocation2 + $0x30] sm:$0xff] %v2181
          %2206 = vst [vmem:[#allocation2 + $0x38] sm:$0xff] %v2182
          %2207 = vst [vmem:[#allocation2 + $0x40] sm:$0xff] %v2183
          %2208 = vst [vmem:[#allocation2 + $0x48] sm:$0xff] %v2184
          %2209 = vst [vmem:[#allocation2 + $0x50] sm:$0xff] %v2185
          %2210 = vst [vmem:[#allocation2 + $0x58] sm:$0xff] %v2186
          %2211 = vst [vmem:[#allocation2 + $0x60] sm:$0xff] %v2187
          %2212 = vst [vmem:[#allocation2 + $0x68] sm:$0xff] %v2188
          %2213 = vst [vmem:[#allocation2 + $0x70] sm:$0xff] %v2189
          %2214 = vst [vmem:[#allocation2 + $0x78] sm:$0xff] %v2190
          %2215 = vst [vmem:[#allocation2 + $0x80] sm:$0xff] %v2191
          %2216 = vst [vmem:[#allocation2 + $0x88] sm:$0xff] %v2192
          %2217 = vst [vmem:[#allocation2 + $0x90] sm:$0xff] %v2193
          %2218 = vst [vmem:[#allocation2 + $0x98] sm:$0xff] %v2194
          %2219 = vst [vmem:[#allocation2 + $0xa0] sm:$0xff] %v2195
          %2220 = vst [vmem:[#allocation2 + $0xa8] sm:$0xff] %v2196
          %2221 = vst [vmem:[#allocation2 + $0xb0] sm:$0xff] %v2197
          %2222 = vst [vmem:[#allocation2 + $0xb8] sm:$0xff] %v2198
        $region60: #{tpu_custom_call.1} parent=39 // pred_fallthru
          _
        %p2223 = scmp.eq.s32.totalorder %s21, 3
        // Predicated region
        $region61: #{tpu_custom_call.1} parent=39 // pred_check
          %p2224 = pneg %p2223
        $region62: #{tpu_custom_call.1} parent=39 // pred_check_branch
          %2226 = sbr.rel (%p2224) target = $region64
        $region63: #{tpu_custom_call.1} parent=39 // pred_region
          %v2227 = vld [vmem:[#allocation2] sm:$0xff]
          %v2228 = vld [vmem:[#allocation2 + $0x8] sm:$0xff]
          %v2229 = vld [vmem:[#allocation2 + $0x10] sm:$0xff]
          %v2230 = vld [vmem:[#allocation2 + $0x18] sm:$0xff]
          %v2231 = vld [vmem:[#allocation2 + $0x20] sm:$0xff]
          %v2232 = vld [vmem:[#allocation2 + $0x28] sm:$0xff]
          %v2233 = vld [vmem:[#allocation2 + $0x30] sm:$0xff]
          %v2234 = vld [vmem:[#allocation2 + $0x38] sm:$0xff]
          %v2235 = vld [vmem:[#allocation2 + $0x40] sm:$0xff]
          %v2236 = vld [vmem:[#allocation2 + $0x48] sm:$0xff]
          %v2237 = vld [vmem:[#allocation2 + $0x50] sm:$0xff]
          %v2238 = vld [vmem:[#allocation2 + $0x58] sm:$0xff]
          %v2239 = vld [vmem:[#allocation2 + $0x60] sm:$0xff]
          %v2240 = vld [vmem:[#allocation2 + $0x68] sm:$0xff]
          %v2241 = vld [vmem:[#allocation2 + $0x70] sm:$0xff]
          %v2242 = vld [vmem:[#allocation2 + $0x78] sm:$0xff]
          %v2243 = vld [vmem:[#allocation2 + $0x80] sm:$0xff]
          %v2244 = vld [vmem:[#allocation2 + $0x88] sm:$0xff]
          %v2245 = vld [vmem:[#allocation2 + $0x90] sm:$0xff]
          %v2246 = vld [vmem:[#allocation2 + $0x98] sm:$0xff]
          %v2247 = vld [vmem:[#allocation2 + $0xa0] sm:$0xff]
          %v2248 = vld [vmem:[#allocation2 + $0xa8] sm:$0xff]
          %v2249 = vld [vmem:[#allocation2 + $0xb0] sm:$0xff]
          %v2250 = vld [vmem:[#allocation2 + $0xb8] sm:$0xff]
          %s2251 = scalar_lea.vmem [#allocation8], 32
          %v2252 = vld [vmem:[%s2251] sm:$0xf]
          %v2254 = vlaneseq
          %v2255 = vshrl.u32 %v2254, 7
          %v2256 = vsub.s32 0, %v2255
          %v2257 = vrot.slane %v2252, %v2256
          %v2258 = vlaneseq
          %v2259 = vshrl.u32 %v2258, 7
          %v2260 = vsub.s32 1, %v2259
          %v2261 = vrot.slane %v2252, %v2260
          %v2262 = vlaneseq
          %v2263 = vshrl.u32 %v2262, 7
          %v2264 = vsub.s32 2, %v2263
          %v2265 = vrot.slane %v2252, %v2264
          %v2266 = vlaneseq
          %v2267 = vshrl.u32 %v2266, 7
          %v2268 = vsub.s32 3, %v2267
          %v2269 = vrot.slane %v2252, %v2268
          %v2274 = vmul.f32 %v2227, %v2257
          %v2275 = vmul.f32 %v2228, %v2261
          %v2276 = vmul.f32 %v2229, %v2265
          %v2277 = vmul.f32 %v2230, %v2269
          %v2278 = vmul.f32 %v2231, %v2257
          %v2279 = vmul.f32 %v2232, %v2261
          %v2280 = vmul.f32 %v2233, %v2265
          %v2281 = vmul.f32 %v2234, %v2269
          %v2282 = vmul.f32 %v2235, %v2257
          %v2283 = vmul.f32 %v2236, %v2261
          %v2284 = vmul.f32 %v2237, %v2265
          %v2285 = vmul.f32 %v2238, %v2269
          %v2286 = vmul.f32 %v2239, %v2257
          %v2287 = vmul.f32 %v2240, %v2261
          %v2288 = vmul.f32 %v2241, %v2265
          %v2289 = vmul.f32 %v2242, %v2269
          %v2290 = vmul.f32 %v2243, %v2257
          %v2291 = vmul.f32 %v2244, %v2261
          %v2292 = vmul.f32 %v2245, %v2265
          %v2293 = vmul.f32 %v2246, %v2269
          %v2294 = vmul.f32 %v2247, %v2257
          %v2295 = vmul.f32 %v2248, %v2261
          %v2296 = vmul.f32 %v2249, %v2265
          %v2297 = vmul.f32 %v2250, %v2269
          %v2298 = vadd.f32 %v2274, %v2275
          %v2299 = vadd.f32 %v2298, %v2276
          %v2300 = vadd.f32 %v2299, %v2277
          %2301 = vadd.xlane.f32.xlu0 %v2300
          %v2302 = vpop.xlane.xlu0 %2301
          %v2303 = vadd.f32 %v2278, %v2279
          %v2304 = vadd.f32 %v2303, %v2280
          %v2305 = vadd.f32 %v2304, %v2281
          %2306 = vadd.xlane.f32.xlu0 %v2305
          %v2307 = vpop.xlane.xlu0 %2306
          %v2308 = vadd.f32 %v2282, %v2283
          %v2309 = vadd.f32 %v2308, %v2284
          %v2310 = vadd.f32 %v2309, %v2285
          %2311 = vadd.xlane.f32.xlu0 %v2310
          %v2312 = vpop.xlane.xlu0 %2311
          %v2313 = vadd.f32 %v2286, %v2287
          %v2314 = vadd.f32 %v2313, %v2288
          %v2315 = vadd.f32 %v2314, %v2289
          %2316 = vadd.xlane.f32.xlu0 %v2315
          %v2317 = vpop.xlane.xlu0 %2316
          %v2318 = vadd.f32 %v2290, %v2291
          %v2319 = vadd.f32 %v2318, %v2292
          %v2320 = vadd.f32 %v2319, %v2293
          %2321 = vadd.xlane.f32.xlu0 %v2320
          %v2322 = vpop.xlane.xlu0 %2321
          %v2323 = vadd.f32 %v2294, %v2295
          %v2324 = vadd.f32 %v2323, %v2296
          %v2325 = vadd.f32 %v2324, %v2297
          %2326 = vadd.xlane.f32.xlu0 %v2325
          %v2327 = vpop.xlane.xlu0 %2326
          %s2328 = sld [smem:[#allocation3]]
          %v2329 = vstv %s2328
          %v2330 = vadd.f32 %v2302, %v2329
          %v2331 = vadd.f32 %v2307, %v2329
          %v2332 = vadd.f32 %v2312, %v2329
          %v2333 = vadd.f32 %v2317, %v2329
          %v2334 = vadd.f32 %v2322, %v2329
          %v2335 = vadd.f32 %v2327, %v2329
          %v2336 = vxor.u32 %v2330, 2147483648
          %v2337 = vxor.u32 %v2331, 2147483648
          %v2338 = vxor.u32 %v2332, 2147483648
          %v2339 = vxor.u32 %v2333, 2147483648
          %v2340 = vxor.u32 %v2334, 2147483648
          %v2341 = vxor.u32 %v2335, 2147483648
          %v2342 = vmul.f32 %v2336, 1.442695
          %v2343 = vpow.pop %v2342
          %v2344 = vmul.f32 %v2337, 1.442695
          %v2345 = vpow.pop %v2344
          %v2346 = vmul.f32 %v2338, 1.442695
          %v2347 = vpow.pop %v2346
          %v2348 = vmul.f32 %v2339, 1.442695
          %v2349 = vpow.pop %v2348
          %v2350 = vmul.f32 %v2340, 1.442695
          %v2351 = vpow.pop %v2350
          %v2352 = vmul.f32 %v2341, 1.442695
          %v2353 = vpow.pop %v2352
          %v2354 = vadd.f32 %v2343, 1.0
          %v2355 = vadd.f32 %v2345, 1.0
          %v2356 = vadd.f32 %v2347, 1.0
          %v2357 = vadd.f32 %v2349, 1.0
          %v2358 = vadd.f32 %v2351, 1.0
          %v2359 = vadd.f32 %v2353, 1.0
          %v2360 = vrcp.pop %v2354
          %v2361 = vmul.f32 1.0, %v2360
          %v2362 = vrcp.pop %v2355
          %v2363 = vmul.f32 1.0, %v2362
          %v2364 = vrcp.pop %v2356
          %v2365 = vmul.f32 1.0, %v2364
          %v2366 = vrcp.pop %v2357
          %v2367 = vmul.f32 1.0, %v2366
          %v2368 = vrcp.pop %v2358
          %v2369 = vmul.f32 1.0, %v2368
          %v2370 = vrcp.pop %v2359
          %v2371 = vmul.f32 1.0, %v2370
          %vm2372 = vcmask 7168
          %2373 = vst.msk [vmem:[%s5] sm:$0xff] %vm2372, %v2361
          %2374 = vst.msk [vmem:[%s5 + $0x8] sm:$0xff] %vm2372, %v2363
          %2375 = vst.msk [vmem:[%s5 + $0x10] sm:$0xff] %vm2372, %v2365
          %2376 = vst.msk [vmem:[%s5 + $0x18] sm:$0xff] %vm2372, %v2367
          %2377 = vst.msk [vmem:[%s5 + $0x20] sm:$0xff] %vm2372, %v2369
          %2378 = vst.msk [vmem:[%s5 + $0x28] sm:$0xff] %vm2372, %v2371
        $region64: #{tpu_custom_call.1} parent=39 // pred_fallthru
          _
        // Predicated region
        $region65: #{tpu_custom_call.1} parent=39 // pred_check
          %p2379 = pneg %p150
        $region66: #{tpu_custom_call.1} parent=39 // pred_check_branch
          %2381 = sbr.rel (%p2379) target = $region68
        $region67: #{tpu_custom_call.1} parent=39 // pred_region
          _
        $region68: #{tpu_custom_call.1} parent=39 // pred_fallthru
          _
        // Predicated region
        $region69: #{tpu_custom_call.1} parent=39 // pred_check
          %p2382 = pneg %p150
        $region70: #{tpu_custom_call.1} parent=39 // pred_check_branch
          %2384 = sbr.rel (%p2382) target = $region72
        $region71: #{tpu_custom_call.1} parent=39 // pred_region
          _
        $region72: #{tpu_custom_call.1} parent=39 // pred_fallthru
          _
      $region40: #{tpu_custom_call.1} parent=5 // pred_fallthru
        _
      %p2385 = scmp.le.s32.totalorder 2, %s16
      // Predicated region
      $region73: #{tpu_custom_call.1} parent=5 // pred_check
        %p2386 = pneg %p2385
      $region74: #{tpu_custom_call.1} parent=5 // pred_check_branch
        %2388 = sbr.rel (%p2386) target = $region76
      $region75: #{tpu_custom_call.1} parent=5 // pred_region
        %s2389 = ssub.s32 %s16, 2
      $region76: #{tpu_custom_call.1} parent=5 // pred_fallthru
        _
    $region6: #{tpu_custom_call.1} parent=1 // loop_footer
      %s20 = sadd.s32 1, %s16
    $region7: #{tpu_custom_call.1} parent=1 // loop_footer_branch
      %15 = sbr.rel target = $region3
    $region8: #{tpu_custom_call.1} parent=1 // loop_exit
      _
    %2390 = vsyncpa [#allocation5], 1
    %s2391 = scalar_lea.sflag [#allocation5], 1
    %2392 = vsyncpa %s2391, 1
    %2393 = vsyncpa [#allocation7], 1
    %s2394 = scalar_lea.sflag [#allocation7], 1
    %2395 = vsyncpa %s2394, 1

</llo_original>
